<compile_context>
chip_gen: v5e
topology: v5e:2x2
jax: 0.10.0
libtpu: 0.0.40
codegen_flags: <defaults>
</compile_context>

<pallas_src>
import functools

import jax
import jax.numpy as jnp
from jax.experimental import pallas as pl
from jax.experimental.pallas import tpu as pltpu


# ----------------------------------------------------------------------------
# In-kernel helpers (operate on traced values, fully unrolled)
# ----------------------------------------------------------------------------
def _bilstm_timemajor(x_flat, wi_fw, wi_bw, wh_bf16, b_row, *, L, N, H):
    """Fused bidirectional LSTM on a flat time-major input.

    x_flat:  (L*N, V)   rows ordered (t, n).
    wi_fw:   (V, 8H)    forward input weights in forward-gate columns, zeros elsewhere.
    wi_bw:   (V, 8H)    backward input weights in backward-gate columns, zeros elsewhere.
    wh_bf16: (2H, 8H)   block-diagonal recurrent weights (bf16); rows = [h_fwd | h_bwd].
    b_row:   (1, 8H)    b_ih + b_hh, column blocks (H wide) ordered
                        [i_f, i_b, f_f, f_b, g_f, g_b, o_f, o_b].
    Returns (L*N, 2H) flat time-major outputs = PyTorch-style [h_fwd_t | h_bwd_t].
    """
    # Time-reversed copy (off the serial chain): row block t <- row block L-1-t.
    x_rev = jnp.concatenate(
        [x_flat[(L - 1 - t) * N:(L - t) * N, :] for t in range(L)], axis=0)

    # Direction-combined hoisted input projection: forward columns come from x_t,
    # backward columns from x_{L-1-t}.  Both matmuls are off the critical chain.
    gin = (jnp.dot(x_flat, wi_fw, preferred_element_type=jnp.float32)
           + jnp.dot(x_rev, wi_bw, preferred_element_type=jnp.float32)
           + b_row)                                                   # (L*N, 8H)

    h = jnp.zeros((N, 2 * H), jnp.float32)          # [h_fwd | h_bwd]
    c = jnp.zeros((N, 2 * H), jnp.float32)
    outs_f = [None] * L
    outs_b = [None] * L
    for t in range(L):                               # static unroll (L in {8, 4, 2})
        # Serial-chain matmul: bf16 operands, f32 accumulate (single MXU pass).
        g = gin[t * N:(t + 1) * N, :] + jnp.dot(
            h.astype(jnp.bfloat16), wh_bf16, preferred_element_type=jnp.float32)
        sig = jax.nn.sigmoid(g)                      # full-width EUP push
        tg = jnp.tanh(g)                             # full-width EUP push
        i_g = sig[:, 0 * 2 * H:1 * 2 * H]
        f_g = sig[:, 1 * 2 * H:2 * 2 * H]
        g_g = tg[:, 2 * 2 * H:3 * 2 * H]
        o_g = sig[:, 3 * 2 * H:4 * 2 * H]
        c = f_g * c + i_g * g_g
        h = o_g * jnp.tanh(c)
        outs_f[t] = h[:, :H]
        outs_b[L - 1 - t] = h[:, H:]
    att_rows = [jnp.concatenate([outs_f[t], outs_b[t]], axis=-1) for t in range(L)]
    return jnp.concatenate(att_rows, axis=0)         # (L*N, 2H)


def _att_weighted_sum(x_flat, att_flat, w_row, b_scalar, *, L, N):
    """x_next[n,:] = sum_t x_flat[t*N+n,:] * (att_flat[t*N+n,:] @ w + b)."""
    # One wide score computation for all (t, n) rows.
    s = jnp.sum(att_flat * w_row, axis=-1, keepdims=True) + b_scalar   # (L*N, 1)
    acc = x_flat[0:N, :] * s[0:N, :]
    for t in range(1, L):
        acc = acc + x_flat[t * N:(t + 1) * N, :] * s[t * N:(t + 1) * N, :]
    return acc                                                          # (N, V)


# ----------------------------------------------------------------------------
# Single fused forward kernel
# ----------------------------------------------------------------------------
def fused_forward_kernel(x_ref, wi_ref, wh_ref, wmat_ref, vec_ref, out_ref,
                         *, L1, N1, L2, N2, L3, N3, H, V, HD, OUT):
    vec = vec_ref[...]                                  # (12, 8H) bias/row-vector pack
    x1 = x_ref[...]                                     # (L1*N1, V)

    # ---------------- phrase level -------------------------------------------
    wi1 = wi_ref[0]                                     # (2V, 8H)
    att1 = _bilstm_timemajor(x1, wi1[0:V, :], wi1[V:2 * V, :], wh_ref[0],
                             vec[0:1, :], L=L1, N=N1, H=H)
    # afterFeatures Linear + ReLU as one (L1*N1, 2H) @ (2H, 2H) matmul.
    feat = jnp.maximum(
        jnp.dot(att1, wmat_ref[0:2 * H, :], preferred_element_type=jnp.float32)
        + vec[3:4, 0:2 * H], 0.0)
    # Folded afterPhrase score fused into the attention-weighted sum.
    x2 = _att_weighted_sum(x1, feat, vec[4:5, 0:2 * H], vec[9:10, 0:1],
                           L=L1, N=N1)                  # (N1, V)

    # ---------------- field level --------------------------------------------
    # Row ordering makes x2 directly the flat time-major field input (row = p*N2 + n2).
    wi2 = wi_ref[1]
    att2 = _bilstm_timemajor(x2, wi2[0:V, :], wi2[V:2 * V, :], wh_ref[1],
                             vec[1:2, :], L=L2, N=N2, H=H)
    x3 = _att_weighted_sum(x2, att2, vec[5:6, 0:2 * H], vec[10:11, 0:1],
                           L=L2, N=N2)                  # (N2, V)

    # ---------------- doc level ----------------------------------------------
    wi3 = wi_ref[2]
    att3 = _bilstm_timemajor(x3, wi3[0:V, :], wi3[V:2 * V, :], wh_ref[2],
                             vec[2:3, :], L=L3, N=N3, H=H)
    x4 = _att_weighted_sum(x3, att3, vec[6:7, 0:2 * H], vec[11:12, 0:1],
                           L=L3, N=N3)                  # (B, V)

    # ---------------- head: hidden Linear+ReLU, out Linear, softmax ----------
    hid = jnp.maximum(
        jnp.dot(x4, wmat_ref[2 * H:2 * H + V, :], preferred_element_type=jnp.float32)
        + vec[7:8, 0:HD], 0.0)
    logits = jnp.dot(hid, wmat_ref[2 * H + V:2 * H + V + HD, 0:OUT],
                     preferred_element_type=jnp.float32) + vec[8:9, 0:OUT]
    m = jnp.max(logits, axis=-1, keepdims=True)
    e = jnp.exp(logits - m)
    out_ref[...] = e / jnp.sum(e, axis=-1, keepdims=True)


# ----------------------------------------------------------------------------
# Wrapper
# ----------------------------------------------------------------------------
def _full_spec(a):
    nd = a.ndim
    return pl.BlockSpec(a.shape, lambda i, _nd=nd: (0,) * _nd)


def forward(x, fused_params, conf):
    """x: (B, numFields, numPhrases, phraseLen, vecLen) float32 -> (B, outDim)."""
    B, F, P, L, V = x.shape
    H = conf["phraseFeaturesDim"]
    HD = conf["hiddenDim"]
    OUT = conf["outDim"]
    N1, N2, N3 = P * F * B, F * B, B

    # Flat time-major phrase input: row = l*(P*F*B) + p*(F*B) + f*B + b.  With this
    # ordering, every level's attention-sum output is already the next level's flat
    # time-major input, so the kernel needs no transposes/reshapes at all.
    x1 = jnp.transpose(x, (3, 2, 1, 0, 4)).reshape(L * P * F * B, V).astype(jnp.float32)

    wi_pack, wh_pack, wmat_pack, vec_pack = fused_params
    args = (x1, wi_pack, wh_pack, wmat_pack, vec_pack)
    kernel = functools.partial(fused_forward_kernel,
                               L1=L, N1=N1, L2=P, N2=N2, L3=F, N3=N3,
                               H=H, V=V, HD=HD, OUT=OUT)
    return pl.pallas_call(
        kernel,
        out_shape=jax.ShapeDtypeStruct((B, OUT), jnp.float32),
        grid=(1,),
        in_specs=[_full_spec(a) for a in args],
        out_specs=pl.BlockSpec((B, OUT), lambda i: (0, 0)),
        compiler_params=pltpu.CompilerParams(dimension_semantics=("arbitrary",)),
    )(*args)


# ----------------------------------------------------------------------------
# Deterministic parameter init (PyTorch-style uniform ranges)
# ----------------------------------------------------------------------------
def _uniform(key, shape, k):
    return jax.random.uniform(key, shape, jnp.float32, -k, k)


def init_lstm_dir(key, V, H):
    k = 1.0 / (H ** 0.5)
    k1, k2, k3, k4 = jax.random.split(key, 4)
    wi = _uniform(k1, (4 * H, V), k).T                       # (V, 4H), gates i,f,g,o
    wh = _uniform(k2, (4 * H, H), k).T                       # (H, 4H)
    b = (_uniform(k3, (4 * H,), k) + _uniform(k4, (4 * H,), k)).reshape(1, 4 * H)
    return wi, wh, b


def init_bilstm(key, V, H):
    kf, kb = jax.random.split(key)
    wi_f, wh_f, b_f = init_lstm_dir(kf, V, H)
    wi_b, wh_b, b_b = init_lstm_dir(kb, V, H)
    return dict(wi_f=wi_f, wh_f=wh_f, b_f=b_f, wi_b=wi_b, wh_b=wh_b, b_b=b_b)


def init_linear(key, din, dout):
    k = 1.0 / (din ** 0.5)
    k1, k2 = jax.random.split(key)
    return _uniform(k1, (dout, din), k).T, _uniform(k2, (1, dout), k)


def init_params(key, conf):
    V = conf["vecLen"]
    Dp, Df, Dd = conf["phraseFeaturesDim"], conf["fieldFeaturesDim"], conf["docFeaturesDim"]
    keys = jax.random.split(key, 10)
    return dict(
        phrase=init_bilstm(keys[0], V, Dp),
        field=init_bilstm(keys[1], V, Df),
        doc=init_bilstm(keys[2], V, Dd),
        afterFeatures=[init_linear(keys[3], 2 * Dp, 2 * Dp)],
        afterPhrase=[init_linear(keys[4], 2 * Dp, 2 * Dp),
                     init_linear(keys[5], 2 * Dp, 1)],
        afterField=[init_linear(keys[6], 2 * Df, 1)],
        afterDoc=[init_linear(keys[7], 2 * Dd, 1)],
        hidden=[init_linear(keys[8], V, conf["hiddenDim"])],
        out=init_linear(keys[9], conf["hiddenDim"], conf["outDim"]),
    )


# ----------------------------------------------------------------------------
# Host-side parameter packing (4 contiguous arrays)
# ----------------------------------------------------------------------------
def _fuse_bilstm(p, V, H):
    """Direction-fused LSTM weights: (2V,8H) input proj, (2H,8H) block-diag recur, (1,8H) bias."""
    wi_f, wh_f, b_f = p["wi_f"], p["wh_f"], p["b_f"]
    wi_b, wh_b, b_b = p["wi_b"], p["wh_b"], p["b_b"]
    zV = jnp.zeros((V, H), jnp.float32)
    zH = jnp.zeros((H, H), jnp.float32)
    wi_fw_blocks, wi_bw_blocks, wh_blocks, b_blocks = [], [], [], []
    for j in range(4):                                       # gate order i, f, g, o
        sl = slice(j * H, (j + 1) * H)
        wi_fw_blocks += [wi_f[:, sl], zV]
        wi_bw_blocks += [zV, wi_b[:, sl]]
        b_blocks += [b_f[:, sl], b_b[:, sl]]
        wh_blocks += [jnp.concatenate([wh_f[:, sl], zH], axis=0),
                      jnp.concatenate([zH, wh_b[:, sl]], axis=0)]
    wi = jnp.concatenate([jnp.concatenate(wi_fw_blocks, axis=1),
                          jnp.concatenate(wi_bw_blocks, axis=1)], axis=0)   # (2V, 8H)
    wh = jnp.concatenate(wh_blocks, axis=1)                                  # (2H, 8H)
    b = jnp.concatenate(b_blocks, axis=1)                                    # (1, 8H)
    return wi, wh, b


def _row(v, width):
    v = jnp.asarray(v, jnp.float32).reshape(1, -1)
    return jnp.pad(v, ((0, 0), (0, width - v.shape[1])))


def fuse_params(params, conf):
    V = conf["vecLen"]
    H = conf["phraseFeaturesDim"]
    HD = conf["hiddenDim"]
    OUT = conf["outDim"]
    assert conf["fieldFeaturesDim"] == H and conf["docFeaturesDim"] == H
    assert HD == 2 * H, "packing assumes hiddenDim == 2*featuresDim"

    wi_p, wh_p, b_p = _fuse_bilstm(params["phrase"], V, H)
    wi_f, wh_f, b_f = _fuse_bilstm(params["field"], V, H)
    wi_d, wh_d, b_d = _fuse_bilstm(params["doc"], V, H)
    wi_pack = jnp.stack([wi_p, wi_f, wi_d], axis=0)                      # (3, 2V, 8H) f32
    wh_pack = jnp.stack([wh_p, wh_f, wh_d], axis=0).astype(jnp.bfloat16)  # (3, 2H, 8H) bf16

    w_af, b_af = params["afterFeatures"][0]
    w0, b0 = params["afterPhrase"][0]
    w1, b1 = params["afterPhrase"][1]
    w_ap = (w0 @ w1).reshape(1, -1)              # fold the two linears (no ReLU between)
    b_ap = (b0 @ w1 + b1).reshape(())            # scalar
    w_afl = params["afterField"][0][0].reshape(1, -1)
    b_afl = params["afterField"][0][1].reshape(())
    w_ad = params["afterDoc"][0][0].reshape(1, -1)
    b_ad = params["afterDoc"][0][1].reshape(())
    w_h, b_h = params["hidden"][0]
    w_o, b_o = params["out"]

    # Dense-weight pack (rows: w_af | w_h | w_o padded), columns = 2H.
    w_o_pad = jnp.zeros((HD, 2 * H), jnp.float32).at[:, :OUT].set(w_o)
    wmat_pack = jnp.concatenate([w_af, w_h, w_o_pad], axis=0)            # (2H+V+HD, 2H)

    # Bias / row-vector / scalar pack (12, 8H).
    W = 8 * H
    vec_pack = jnp.concatenate([
        b_p, b_f, b_d,                                   # rows 0-2: LSTM gate biases
        _row(b_af, W), _row(w_ap, W), _row(w_afl, W), _row(w_ad, W),
        _row(b_h, W), _row(b_o, W),
        _row(b_ap, W), _row(b_afl, W), _row(b_ad, W),    # rows 9-11: scalars at lane 0
    ], axis=0)

    return wi_pack, wh_pack, wmat_pack, vec_pack


# ----------------------------------------------------------------------------
# Pure-JAX reference (mirrors the PyTorch module structure) for validation
# ----------------------------------------------------------------------------
def _ref_bilstm(x_nlv, p, H):
    N, L, _ = x_nlv.shape

    def run(wi, wh, b, reverse):
        h = jnp.zeros((N, H), jnp.float32)
        c = jnp.zeros((N, H), jnp.float32)
        outs = [None] * L
        order = range(L - 1, -1, -1) if reverse else range(L)
        for t in order:
            g = x_nlv[:, t, :] @ wi + h @ wh + b
            i = jax.nn.sigmoid(g[:, :H])
            f = jax.nn.sigmoid(g[:, H:2 * H])
            gg = jnp.tanh(g[:, 2 * H:3 * H])
            o = jax.nn.sigmoid(g[:, 3 * H:])
            c = f * c + i * gg
            h = o * jnp.tanh(c)
            outs[t] = h
        return jnp.stack(outs, axis=1)

    of = run(p["wi_f"], p["wh_f"], p["b_f"], False)
    ob = run(p["wi_b"], p["wh_b"], p["b_b"], True)
    return jnp.concatenate([of, ob], axis=-1)


def reference_forward(x, params, conf):
    L, V = conf["phraseLen"], conf["vecLen"]
    P, F = conf["numPhrases"], conf["numFields"]
    H = conf["phraseFeaturesDim"]
    x1 = x.reshape(-1, L, V)
    att = _ref_bilstm(x1, params["phrase"], H)
    w_af, b_af = params["afterFeatures"][0]
    att = jax.nn.relu(att @ w_af + b_af)
    w0, b0 = params["afterPhrase"][0]
    w1, b1 = params["afterPhrase"][1]
    att = (att @ w0 + b0) @ w1 + b1
    x2 = jnp.sum(x1 * att, axis=1).reshape(-1, P, V)
    att = _ref_bilstm(x2, params["field"], H)
    wf, bf = params["afterField"][0]
    x3 = jnp.sum(x2 * (att @ wf + bf), axis=1).reshape(-1, F, V)
    att = _ref_bilstm(x3, params["doc"], H)
    wd, bd = params["afterDoc"][0]
    x4 = jnp.sum(x3 * (att @ wd + bd), axis=1)
    wh, bh = params["hidden"][0]
    h = jax.nn.relu(x4 @ wh + bh)
    wo, bo = params["out"]
    return jax.nn.softmax(h @ wo + bo, axis=1)


# TODO(synk): masking branch, dropout layers, testLstmStatus path and the GRU variant
# are disabled by the chosen config (masking=False, dropouts=0.0, rnnType='LSTM') and
# therefore not implemented.

if __name__ == "__main__":
    conf = dict(vecLen=32, phraseLen=8, numPhrases=4, numFields=2,
                phraseFeaturesDim=16, fieldFeaturesDim=16, docFeaturesDim=16,
                hiddenDim=32, outDim=4)
    B = 2

    key = jax.random.PRNGKey(0)
    kx, kp = jax.random.split(key)
    x = jax.random.normal(
        kx, (B, conf["numFields"], conf["numPhrases"], conf["phraseLen"], conf["vecLen"]),
        jnp.float32)
    params = init_params(kp, conf)
    fused = fuse_params(params, conf)

    out = forward(x, fused, conf)
    out = jax.block_until_ready(out)

    assert out.shape == (B, conf["outDim"]), out.shape
    assert bool(jnp.all(jnp.isfinite(out)))
    assert bool(jnp.allclose(jnp.sum(out, axis=1), 1.0, atol=1e-3))

    # Tolerance 1e-2: the recurrence matmul uses bf16 operands (f32 accumulate) on the
    # serial LSTM chain, per the perf review; the f32 reference stays exact.
    ref = reference_forward(x, params, conf)
    assert bool(jnp.allclose(out, ref, atol=1e-2)), (out, ref)

    print("KERNEL_OK")
</pallas_src>

<mosaic_0001>
module attributes {stable_mosaic.version = 11 : i64} {
  func.func @fused_forward_kernel(%arg0: i32, %arg1: memref<128x32xf32, #tpu.memory_space<vmem>>, %arg2: memref<3x64x128xf32, #tpu.memory_space<vmem>>, %arg3: memref<3x32x128xbf16, #tpu.memory_space<vmem>>, %arg4: memref<96x32xf32, #tpu.memory_space<vmem>>, %arg5: memref<12x128xf32, #tpu.memory_space<vmem>>, %arg6: memref<2x4xf32, #tpu.memory_space<vmem>>) attributes {dimension_semantics = [#tpu.dimension_semantics<arbitrary>], iteration_bounds = array<i64: 1>, scalar_prefetch = 0 : i64, scratch_operands = 0 : i64, tpu.core_type = #tpu.core_type<tc>, window_params = [{pipeline_mode = #tpu.pipeline_mode<synchronous>, transform_indices = @transform_0, window_bounds = array<i64: 128, 32>}, {pipeline_mode = #tpu.pipeline_mode<synchronous>, transform_indices = @transform_1, window_bounds = array<i64: 3, 64, 128>}, {pipeline_mode = #tpu.pipeline_mode<synchronous>, transform_indices = @transform_2, window_bounds = array<i64: 3, 32, 128>}, {pipeline_mode = #tpu.pipeline_mode<synchronous>, transform_indices = @transform_3, window_bounds = array<i64: 96, 32>}, {pipeline_mode = #tpu.pipeline_mode<synchronous>, transform_indices = @transform_4, window_bounds = array<i64: 12, 128>}, {pipeline_mode = #tpu.pipeline_mode<synchronous>, transform_indices = @transform_5, window_bounds = array<i64: 2, 4>}]} {
    %c0 = arith.constant 0 : index
    %c0_0 = arith.constant 0 : index
    %0 = vector.load %arg5[%c0, %c0_0] : memref<12x128xf32, #tpu.memory_space<vmem>>, vector<12x128xf32>
    %c0_1 = arith.constant 0 : index
    %c0_2 = arith.constant 0 : index
    %1 = vector.load %arg1[%c0_1, %c0_2] : memref<128x32xf32, #tpu.memory_space<vmem>>, vector<128x32xf32>
    %c0_3 = arith.constant 0 : index
    %c0_4 = arith.constant 0 : index
    %c0_5 = arith.constant 0 : index
    %2 = vector.load %arg2[%c0_3, %c0_4, %c0_5] : memref<3x64x128xf32, #tpu.memory_space<vmem>>, vector<1x64x128xf32>
    %3 = vector.shape_cast %2 : vector<1x64x128xf32> to vector<64x128xf32>
    %4 = vector.extract_strided_slice %3 {offsets = [0, 0], sizes = [32, 128], strides = [1, 1]} : vector<64x128xf32> to vector<32x128xf32>
    %5 = vector.extract_strided_slice %3 {offsets = [32, 0], sizes = [32, 128], strides = [1, 1]} : vector<64x128xf32> to vector<32x128xf32>
    %c0_6 = arith.constant 0 : index
    %c0_7 = arith.constant 0 : index
    %c0_8 = arith.constant 0 : index
    %6 = vector.load %arg3[%c0_6, %c0_7, %c0_8] : memref<3x32x128xbf16, #tpu.memory_space<vmem>>, vector<1x32x128xbf16>
    %7 = vector.shape_cast %6 : vector<1x32x128xbf16> to vector<32x128xbf16>
    %8 = vector.extract_strided_slice %0 {offsets = [0, 0], sizes = [1, 128], strides = [1, 1]} : vector<12x128xf32> to vector<1x128xf32>
    %9 = vector.extract_strided_slice %1 {offsets = [112, 0], sizes = [16, 32], strides = [1, 1]} : vector<128x32xf32> to vector<16x32xf32>
    %10 = vector.extract_strided_slice %1 {offsets = [96, 0], sizes = [16, 32], strides = [1, 1]} : vector<128x32xf32> to vector<16x32xf32>
    %11 = vector.extract_strided_slice %1 {offsets = [80, 0], sizes = [16, 32], strides = [1, 1]} : vector<128x32xf32> to vector<16x32xf32>
    %12 = vector.extract_strided_slice %1 {offsets = [64, 0], sizes = [16, 32], strides = [1, 1]} : vector<128x32xf32> to vector<16x32xf32>
    %13 = vector.extract_strided_slice %1 {offsets = [48, 0], sizes = [16, 32], strides = [1, 1]} : vector<128x32xf32> to vector<16x32xf32>
    %14 = vector.extract_strided_slice %1 {offsets = [32, 0], sizes = [16, 32], strides = [1, 1]} : vector<128x32xf32> to vector<16x32xf32>
    %15 = vector.extract_strided_slice %1 {offsets = [16, 0], sizes = [16, 32], strides = [1, 1]} : vector<128x32xf32> to vector<16x32xf32>
    %16 = vector.extract_strided_slice %1 {offsets = [0, 0], sizes = [16, 32], strides = [1, 1]} : vector<128x32xf32> to vector<16x32xf32>
    %17 = tpu.concatenate %9, %10, %11, %12, %13, %14, %15, %16 in 0 : vector<16x32xf32>, vector<16x32xf32>, vector<16x32xf32>, vector<16x32xf32>, vector<16x32xf32>, vector<16x32xf32>, vector<16x32xf32>, vector<16x32xf32> -> vector<128x32xf32>
    %cst = arith.constant dense<0.000000e+00> : vector<128x128xf32>
    %18 = tpu.matmul %1, %4, %cst {dimension_numbers = #tpu.dot_dimension_numbers<[1], [0], [0], [1], [0, 0, 1, 1], [], []>} : vector<128x32xf32>, vector<32x128xf32>, vector<128x128xf32> -> vector<128x128xf32>
    %cst_9 = arith.constant dense<0.000000e+00> : vector<128x128xf32>
    %19 = tpu.matmul %17, %5, %cst_9 {dimension_numbers = #tpu.dot_dimension_numbers<[1], [0], [0], [1], [0, 0, 1, 1], [], []>} : vector<128x32xf32>, vector<32x128xf32>, vector<128x128xf32> -> vector<128x128xf32>
    %20 = arith.addf %18, %19 : vector<128x128xf32>
    %21 = vector.broadcast %8 : vector<1x128xf32> to vector<128x128xf32>
    %22 = arith.addf %20, %21 : vector<128x128xf32>
    %cst_10 = arith.constant 0.000000e+00 : f32
    %23 = vector.broadcast %cst_10 : f32 to vector<16x32xf32>
    %cst_11 = arith.constant 0.000000e+00 : f32
    %24 = vector.broadcast %cst_11 : f32 to vector<16x32xf32>
    %25 = vector.extract_strided_slice %22 {offsets = [0, 0], sizes = [16, 128], strides = [1, 1]} : vector<128x128xf32> to vector<16x128xf32>
    %26 = arith.truncf %23 : vector<16x32xf32> to vector<16x32xbf16>
    %cst_12 = arith.constant dense<0.000000e+00> : vector<16x128xf32>
    %27 = tpu.matmul %26, %7, %cst_12 {dimension_numbers = #tpu.dot_dimension_numbers<[1], [0], [0], [1], [0, 0, 1, 1], [], []>} : vector<16x32xbf16>, vector<32x128xbf16>, vector<16x128xf32> -> vector<16x128xf32>
    %28 = arith.addf %25, %27 : vector<16x128xf32>
    %29 = arith.negf %28 : vector<16x128xf32>
    %30 = math.exp %29 : vector<16x128xf32>
    %cst_13 = arith.constant 1.000000e+00 : f32
    %31 = vector.broadcast %cst_13 : f32 to vector<16x128xf32>
    %32 = arith.addf %31, %30 : vector<16x128xf32>
    %33 = arith.divf %31, %32 : vector<16x128xf32>
    %34 = math.tanh %28 : vector<16x128xf32>
    %35 = vector.extract_strided_slice %33 {offsets = [0, 0], sizes = [16, 32], strides = [1, 1]} : vector<16x128xf32> to vector<16x32xf32>
    %36 = vector.extract_strided_slice %33 {offsets = [0, 32], sizes = [16, 32], strides = [1, 1]} : vector<16x128xf32> to vector<16x32xf32>
    %37 = vector.extract_strided_slice %34 {offsets = [0, 64], sizes = [16, 32], strides = [1, 1]} : vector<16x128xf32> to vector<16x32xf32>
    %38 = vector.extract_strided_slice %33 {offsets = [0, 96], sizes = [16, 32], strides = [1, 1]} : vector<16x128xf32> to vector<16x32xf32>
    %39 = arith.mulf %36, %24 : vector<16x32xf32>
    %40 = arith.mulf %35, %37 : vector<16x32xf32>
    %41 = arith.addf %39, %40 : vector<16x32xf32>
    %42 = math.tanh %41 : vector<16x32xf32>
    %43 = arith.mulf %38, %42 : vector<16x32xf32>
    %44 = vector.extract_strided_slice %43 {offsets = [0, 0], sizes = [16, 16], strides = [1, 1]} : vector<16x32xf32> to vector<16x16xf32>
    %45 = vector.extract_strided_slice %43 {offsets = [0, 16], sizes = [16, 16], strides = [1, 1]} : vector<16x32xf32> to vector<16x16xf32>
    %46 = vector.extract_strided_slice %22 {offsets = [16, 0], sizes = [16, 128], strides = [1, 1]} : vector<128x128xf32> to vector<16x128xf32>
    %47 = arith.truncf %43 : vector<16x32xf32> to vector<16x32xbf16>
    %cst_14 = arith.constant dense<0.000000e+00> : vector<16x128xf32>
    %48 = tpu.matmul %47, %7, %cst_14 {dimension_numbers = #tpu.dot_dimension_numbers<[1], [0], [0], [1], [0, 0, 1, 1], [], []>} : vector<16x32xbf16>, vector<32x128xbf16>, vector<16x128xf32> -> vector<16x128xf32>
    %49 = arith.addf %46, %48 : vector<16x128xf32>
    %50 = arith.negf %49 : vector<16x128xf32>
    %51 = math.exp %50 : vector<16x128xf32>
    %cst_15 = arith.constant 1.000000e+00 : f32
    %52 = vector.broadcast %cst_15 : f32 to vector<16x128xf32>
    %53 = arith.addf %52, %51 : vector<16x128xf32>
    %54 = arith.divf %52, %53 : vector<16x128xf32>
    %55 = math.tanh %49 : vector<16x128xf32>
    %56 = vector.extract_strided_slice %54 {offsets = [0, 0], sizes = [16, 32], strides = [1, 1]} : vector<16x128xf32> to vector<16x32xf32>
    %57 = vector.extract_strided_slice %54 {offsets = [0, 32], sizes = [16, 32], strides = [1, 1]} : vector<16x128xf32> to vector<16x32xf32>
    %58 = vector.extract_strided_slice %55 {offsets = [0, 64], sizes = [16, 32], strides = [1, 1]} : vector<16x128xf32> to vector<16x32xf32>
    %59 = vector.extract_strided_slice %54 {offsets = [0, 96], sizes = [16, 32], strides = [1, 1]} : vector<16x128xf32> to vector<16x32xf32>
    %60 = arith.mulf %57, %41 : vector<16x32xf32>
    %61 = arith.mulf %56, %58 : vector<16x32xf32>
    %62 = arith.addf %60, %61 : vector<16x32xf32>
    %63 = math.tanh %62 : vector<16x32xf32>
    %64 = arith.mulf %59, %63 : vector<16x32xf32>
    %65 = vector.extract_strided_slice %64 {offsets = [0, 0], sizes = [16, 16], strides = [1, 1]} : vector<16x32xf32> to vector<16x16xf32>
    %66 = vector.extract_strided_slice %64 {offsets = [0, 16], sizes = [16, 16], strides = [1, 1]} : vector<16x32xf32> to vector<16x16xf32>
    %67 = vector.extract_strided_slice %22 {offsets = [32, 0], sizes = [16, 128], strides = [1, 1]} : vector<128x128xf32> to vector<16x128xf32>
    %68 = arith.truncf %64 : vector<16x32xf32> to vector<16x32xbf16>
    %cst_16 = arith.constant dense<0.000000e+00> : vector<16x128xf32>
    %69 = tpu.matmul %68, %7, %cst_16 {dimension_numbers = #tpu.dot_dimension_numbers<[1], [0], [0], [1], [0, 0, 1, 1], [], []>} : vector<16x32xbf16>, vector<32x128xbf16>, vector<16x128xf32> -> vector<16x128xf32>
    %70 = arith.addf %67, %69 : vector<16x128xf32>
    %71 = arith.negf %70 : vector<16x128xf32>
    %72 = math.exp %71 : vector<16x128xf32>
    %cst_17 = arith.constant 1.000000e+00 : f32
    %73 = vector.broadcast %cst_17 : f32 to vector<16x128xf32>
    %74 = arith.addf %73, %72 : vector<16x128xf32>
    %75 = arith.divf %73, %74 : vector<16x128xf32>
    %76 = math.tanh %70 : vector<16x128xf32>
    %77 = vector.extract_strided_slice %75 {offsets = [0, 0], sizes = [16, 32], strides = [1, 1]} : vector<16x128xf32> to vector<16x32xf32>
    %78 = vector.extract_strided_slice %75 {offsets = [0, 32], sizes = [16, 32], strides = [1, 1]} : vector<16x128xf32> to vector<16x32xf32>
    %79 = vector.extract_strided_slice %76 {offsets = [0, 64], sizes = [16, 32], strides = [1, 1]} : vector<16x128xf32> to vector<16x32xf32>
    %80 = vector.extract_strided_slice %75 {offsets = [0, 96], sizes = [16, 32], strides = [1, 1]} : vector<16x128xf32> to vector<16x32xf32>
    %81 = arith.mulf %78, %62 : vector<16x32xf32>
    %82 = arith.mulf %77, %79 : vector<16x32xf32>
    %83 = arith.addf %81, %82 : vector<16x32xf32>
    %84 = math.tanh %83 : vector<16x32xf32>
    %85 = arith.mulf %80, %84 : vector<16x32xf32>
    %86 = vector.extract_strided_slice %85 {offsets = [0, 0], sizes = [16, 16], strides = [1, 1]} : vector<16x32xf32> to vector<16x16xf32>
    %87 = vector.extract_strided_slice %85 {offsets = [0, 16], sizes = [16, 16], strides = [1, 1]} : vector<16x32xf32> to vector<16x16xf32>
    %88 = vector.extract_strided_slice %22 {offsets = [48, 0], sizes = [16, 128], strides = [1, 1]} : vector<128x128xf32> to vector<16x128xf32>
    %89 = arith.truncf %85 : vector<16x32xf32> to vector<16x32xbf16>
    %cst_18 = arith.constant dense<0.000000e+00> : vector<16x128xf32>
    %90 = tpu.matmul %89, %7, %cst_18 {dimension_numbers = #tpu.dot_dimension_numbers<[1], [0], [0], [1], [0, 0, 1, 1], [], []>} : vector<16x32xbf16>, vector<32x128xbf16>, vector<16x128xf32> -> vector<16x128xf32>
    %91 = arith.addf %88, %90 : vector<16x128xf32>
    %92 = arith.negf %91 : vector<16x128xf32>
    %93 = math.exp %92 : vector<16x128xf32>
    %cst_19 = arith.constant 1.000000e+00 : f32
    %94 = vector.broadcast %cst_19 : f32 to vector<16x128xf32>
    %95 = arith.addf %94, %93 : vector<16x128xf32>
    %96 = arith.divf %94, %95 : vector<16x128xf32>
    %97 = math.tanh %91 : vector<16x128xf32>
    %98 = vector.extract_strided_slice %96 {offsets = [0, 0], sizes = [16, 32], strides = [1, 1]} : vector<16x128xf32> to vector<16x32xf32>
    %99 = vector.extract_strided_slice %96 {offsets = [0, 32], sizes = [16, 32], strides = [1, 1]} : vector<16x128xf32> to vector<16x32xf32>
    %100 = vector.extract_strided_slice %97 {offsets = [0, 64], sizes = [16, 32], strides = [1, 1]} : vector<16x128xf32> to vector<16x32xf32>
    %101 = vector.extract_strided_slice %96 {offsets = [0, 96], sizes = [16, 32], strides = [1, 1]} : vector<16x128xf32> to vector<16x32xf32>
    %102 = arith.mulf %99, %83 : vector<16x32xf32>
    %103 = arith.mulf %98, %100 : vector<16x32xf32>
    %104 = arith.addf %102, %103 : vector<16x32xf32>
    %105 = math.tanh %104 : vector<16x32xf32>
    %106 = arith.mulf %101, %105 : vector<16x32xf32>
    %107 = vector.extract_strided_slice %106 {offsets = [0, 0], sizes = [16, 16], strides = [1, 1]} : vector<16x32xf32> to vector<16x16xf32>
    %108 = vector.extract_strided_slice %106 {offsets = [0, 16], sizes = [16, 16], strides = [1, 1]} : vector<16x32xf32> to vector<16x16xf32>
    %109 = vector.extract_strided_slice %22 {offsets = [64, 0], sizes = [16, 128], strides = [1, 1]} : vector<128x128xf32> to vector<16x128xf32>
    %110 = arith.truncf %106 : vector<16x32xf32> to vector<16x32xbf16>
    %cst_20 = arith.constant dense<0.000000e+00> : vector<16x128xf32>
    %111 = tpu.matmul %110, %7, %cst_20 {dimension_numbers = #tpu.dot_dimension_numbers<[1], [0], [0], [1], [0, 0, 1, 1], [], []>} : vector<16x32xbf16>, vector<32x128xbf16>, vector<16x128xf32> -> vector<16x128xf32>
    %112 = arith.addf %109, %111 : vector<16x128xf32>
    %113 = arith.negf %112 : vector<16x128xf32>
    %114 = math.exp %113 : vector<16x128xf32>
    %cst_21 = arith.constant 1.000000e+00 : f32
    %115 = vector.broadcast %cst_21 : f32 to vector<16x128xf32>
    %116 = arith.addf %115, %114 : vector<16x128xf32>
    %117 = arith.divf %115, %116 : vector<16x128xf32>
    %118 = math.tanh %112 : vector<16x128xf32>
    %119 = vector.extract_strided_slice %117 {offsets = [0, 0], sizes = [16, 32], strides = [1, 1]} : vector<16x128xf32> to vector<16x32xf32>
    %120 = vector.extract_strided_slice %117 {offsets = [0, 32], sizes = [16, 32], strides = [1, 1]} : vector<16x128xf32> to vector<16x32xf32>
    %121 = vector.extract_strided_slice %118 {offsets = [0, 64], sizes = [16, 32], strides = [1, 1]} : vector<16x128xf32> to vector<16x32xf32>
    %122 = vector.extract_strided_slice %117 {offsets = [0, 96], sizes = [16, 32], strides = [1, 1]} : vector<16x128xf32> to vector<16x32xf32>
    %123 = arith.mulf %120, %104 : vector<16x32xf32>
    %124 = arith.mulf %119, %121 : vector<16x32xf32>
    %125 = arith.addf %123, %124 : vector<16x32xf32>
    %126 = math.tanh %125 : vector<16x32xf32>
    %127 = arith.mulf %122, %126 : vector<16x32xf32>
    %128 = vector.extract_strided_slice %127 {offsets = [0, 0], sizes = [16, 16], strides = [1, 1]} : vector<16x32xf32> to vector<16x16xf32>
    %129 = vector.extract_strided_slice %127 {offsets = [0, 16], sizes = [16, 16], strides = [1, 1]} : vector<16x32xf32> to vector<16x16xf32>
    %130 = vector.extract_strided_slice %22 {offsets = [80, 0], sizes = [16, 128], strides = [1, 1]} : vector<128x128xf32> to vector<16x128xf32>
    %131 = arith.truncf %127 : vector<16x32xf32> to vector<16x32xbf16>
    %cst_22 = arith.constant dense<0.000000e+00> : vector<16x128xf32>
    %132 = tpu.matmul %131, %7, %cst_22 {dimension_numbers = #tpu.dot_dimension_numbers<[1], [0], [0], [1], [0, 0, 1, 1], [], []>} : vector<16x32xbf16>, vector<32x128xbf16>, vector<16x128xf32> -> vector<16x128xf32>
    %133 = arith.addf %130, %132 : vector<16x128xf32>
    %134 = arith.negf %133 : vector<16x128xf32>
    %135 = math.exp %134 : vector<16x128xf32>
    %cst_23 = arith.constant 1.000000e+00 : f32
    %136 = vector.broadcast %cst_23 : f32 to vector<16x128xf32>
    %137 = arith.addf %136, %135 : vector<16x128xf32>
    %138 = arith.divf %136, %137 : vector<16x128xf32>
    %139 = math.tanh %133 : vector<16x128xf32>
    %140 = vector.extract_strided_slice %138 {offsets = [0, 0], sizes = [16, 32], strides = [1, 1]} : vector<16x128xf32> to vector<16x32xf32>
    %141 = vector.extract_strided_slice %138 {offsets = [0, 32], sizes = [16, 32], strides = [1, 1]} : vector<16x128xf32> to vector<16x32xf32>
    %142 = vector.extract_strided_slice %139 {offsets = [0, 64], sizes = [16, 32], strides = [1, 1]} : vector<16x128xf32> to vector<16x32xf32>
    %143 = vector.extract_strided_slice %138 {offsets = [0, 96], sizes = [16, 32], strides = [1, 1]} : vector<16x128xf32> to vector<16x32xf32>
    %144 = arith.mulf %141, %125 : vector<16x32xf32>
    %145 = arith.mulf %140, %142 : vector<16x32xf32>
    %146 = arith.addf %144, %145 : vector<16x32xf32>
    %147 = math.tanh %146 : vector<16x32xf32>
    %148 = arith.mulf %143, %147 : vector<16x32xf32>
    %149 = vector.extract_strided_slice %148 {offsets = [0, 0], sizes = [16, 16], strides = [1, 1]} : vector<16x32xf32> to vector<16x16xf32>
    %150 = vector.extract_strided_slice %148 {offsets = [0, 16], sizes = [16, 16], strides = [1, 1]} : vector<16x32xf32> to vector<16x16xf32>
    %151 = vector.extract_strided_slice %22 {offsets = [96, 0], sizes = [16, 128], strides = [1, 1]} : vector<128x128xf32> to vector<16x128xf32>
    %152 = arith.truncf %148 : vector<16x32xf32> to vector<16x32xbf16>
    %cst_24 = arith.constant dense<0.000000e+00> : vector<16x128xf32>
    %153 = tpu.matmul %152, %7, %cst_24 {dimension_numbers = #tpu.dot_dimension_numbers<[1], [0], [0], [1], [0, 0, 1, 1], [], []>} : vector<16x32xbf16>, vector<32x128xbf16>, vector<16x128xf32> -> vector<16x128xf32>
    %154 = arith.addf %151, %153 : vector<16x128xf32>
    %155 = arith.negf %154 : vector<16x128xf32>
    %156 = math.exp %155 : vector<16x128xf32>
    %cst_25 = arith.constant 1.000000e+00 : f32
    %157 = vector.broadcast %cst_25 : f32 to vector<16x128xf32>
    %158 = arith.addf %157, %156 : vector<16x128xf32>
    %159 = arith.divf %157, %158 : vector<16x128xf32>
    %160 = math.tanh %154 : vector<16x128xf32>
    %161 = vector.extract_strided_slice %159 {offsets = [0, 0], sizes = [16, 32], strides = [1, 1]} : vector<16x128xf32> to vector<16x32xf32>
    %162 = vector.extract_strided_slice %159 {offsets = [0, 32], sizes = [16, 32], strides = [1, 1]} : vector<16x128xf32> to vector<16x32xf32>
    %163 = vector.extract_strided_slice %160 {offsets = [0, 64], sizes = [16, 32], strides = [1, 1]} : vector<16x128xf32> to vector<16x32xf32>
    %164 = vector.extract_strided_slice %159 {offsets = [0, 96], sizes = [16, 32], strides = [1, 1]} : vector<16x128xf32> to vector<16x32xf32>
    %165 = arith.mulf %162, %146 : vector<16x32xf32>
    %166 = arith.mulf %161, %163 : vector<16x32xf32>
    %167 = arith.addf %165, %166 : vector<16x32xf32>
    %168 = math.tanh %167 : vector<16x32xf32>
    %169 = arith.mulf %164, %168 : vector<16x32xf32>
    %170 = vector.extract_strided_slice %169 {offsets = [0, 0], sizes = [16, 16], strides = [1, 1]} : vector<16x32xf32> to vector<16x16xf32>
    %171 = vector.extract_strided_slice %169 {offsets = [0, 16], sizes = [16, 16], strides = [1, 1]} : vector<16x32xf32> to vector<16x16xf32>
    %172 = vector.extract_strided_slice %22 {offsets = [112, 0], sizes = [16, 128], strides = [1, 1]} : vector<128x128xf32> to vector<16x128xf32>
    %173 = arith.truncf %169 : vector<16x32xf32> to vector<16x32xbf16>
    %cst_26 = arith.constant dense<0.000000e+00> : vector<16x128xf32>
    %174 = tpu.matmul %173, %7, %cst_26 {dimension_numbers = #tpu.dot_dimension_numbers<[1], [0], [0], [1], [0, 0, 1, 1], [], []>} : vector<16x32xbf16>, vector<32x128xbf16>, vector<16x128xf32> -> vector<16x128xf32>
    %175 = arith.addf %172, %174 : vector<16x128xf32>
    %176 = arith.negf %175 : vector<16x128xf32>
    %177 = math.exp %176 : vector<16x128xf32>
    %cst_27 = arith.constant 1.000000e+00 : f32
    %178 = vector.broadcast %cst_27 : f32 to vector<16x128xf32>
    %179 = arith.addf %178, %177 : vector<16x128xf32>
    %180 = arith.divf %178, %179 : vector<16x128xf32>
    %181 = math.tanh %175 : vector<16x128xf32>
    %182 = vector.extract_strided_slice %180 {offsets = [0, 0], sizes = [16, 32], strides = [1, 1]} : vector<16x128xf32> to vector<16x32xf32>
    %183 = vector.extract_strided_slice %180 {offsets = [0, 32], sizes = [16, 32], strides = [1, 1]} : vector<16x128xf32> to vector<16x32xf32>
    %184 = vector.extract_strided_slice %181 {offsets = [0, 64], sizes = [16, 32], strides = [1, 1]} : vector<16x128xf32> to vector<16x32xf32>
    %185 = vector.extract_strided_slice %180 {offsets = [0, 96], sizes = [16, 32], strides = [1, 1]} : vector<16x128xf32> to vector<16x32xf32>
    %186 = arith.mulf %183, %167 : vector<16x32xf32>
    %187 = arith.mulf %182, %184 : vector<16x32xf32>
    %188 = arith.addf %186, %187 : vector<16x32xf32>
    %189 = math.tanh %188 : vector<16x32xf32>
    %190 = arith.mulf %185, %189 : vector<16x32xf32>
    %191 = vector.extract_strided_slice %190 {offsets = [0, 0], sizes = [16, 16], strides = [1, 1]} : vector<16x32xf32> to vector<16x16xf32>
    %192 = vector.extract_strided_slice %190 {offsets = [0, 16], sizes = [16, 16], strides = [1, 1]} : vector<16x32xf32> to vector<16x16xf32>
    %193 = tpu.concatenate %44, %192 in 1 : vector<16x16xf32>, vector<16x16xf32> -> vector<16x32xf32>
    %194 = tpu.concatenate %65, %171 in 1 : vector<16x16xf32>, vector<16x16xf32> -> vector<16x32xf32>
    %195 = tpu.concatenate %86, %150 in 1 : vector<16x16xf32>, vector<16x16xf32> -> vector<16x32xf32>
    %196 = tpu.concatenate %107, %129 in 1 : vector<16x16xf32>, vector<16x16xf32> -> vector<16x32xf32>
    %197 = tpu.concatenate %128, %108 in 1 : vector<16x16xf32>, vector<16x16xf32> -> vector<16x32xf32>
    %198 = tpu.concatenate %149, %87 in 1 : vector<16x16xf32>, vector<16x16xf32> -> vector<16x32xf32>
    %199 = tpu.concatenate %170, %66 in 1 : vector<16x16xf32>, vector<16x16xf32> -> vector<16x32xf32>
    %200 = tpu.concatenate %191, %45 in 1 : vector<16x16xf32>, vector<16x16xf32> -> vector<16x32xf32>
    %201 = tpu.concatenate %193, %194, %195, %196, %197, %198, %199, %200 in 0 : vector<16x32xf32>, vector<16x32xf32>, vector<16x32xf32>, vector<16x32xf32>, vector<16x32xf32>, vector<16x32xf32>, vector<16x32xf32>, vector<16x32xf32> -> vector<128x32xf32>
    %c0_28 = arith.constant 0 : index
    %c0_29 = arith.constant 0 : index
    %202 = vector.load %arg4[%c0_28, %c0_29] : memref<96x32xf32, #tpu.memory_space<vmem>>, vector<32x32xf32>
    %cst_30 = arith.constant dense<0.000000e+00> : vector<128x32xf32>
    %203 = tpu.matmul %201, %202, %cst_30 {dimension_numbers = #tpu.dot_dimension_numbers<[1], [0], [0], [1], [0, 0, 1, 1], [], []>} : vector<128x32xf32>, vector<32x32xf32>, vector<128x32xf32> -> vector<128x32xf32>
    %204 = vector.extract_strided_slice %0 {offsets = [3, 0], sizes = [1, 32], strides = [1, 1]} : vector<12x128xf32> to vector<1x32xf32>
    %205 = vector.broadcast %204 : vector<1x32xf32> to vector<128x32xf32>
    %206 = arith.addf %203, %205 : vector<128x32xf32>
    %cst_31 = arith.constant 0.000000e+00 : f32
    %207 = vector.broadcast %cst_31 : f32 to vector<128x32xf32>
    %208 = arith.maximumf %206, %207 : vector<128x32xf32>
    %209 = vector.extract_strided_slice %0 {offsets = [4, 0], sizes = [1, 32], strides = [1, 1]} : vector<12x128xf32> to vector<1x32xf32>
    %210 = vector.extract_strided_slice %0 {offsets = [9, 0], sizes = [1, 1], strides = [1, 1]} : vector<12x128xf32> to vector<1x1xf32>
    %211 = vector.broadcast %209 : vector<1x32xf32> to vector<128x32xf32>
    %212 = arith.mulf %208, %211 : vector<128x32xf32>
    %cst_32 = arith.constant dense<0.000000e+00> : vector<128xf32>
    %213 = vector.multi_reduction <add>, %212, %cst_32 [1] : vector<128x32xf32> to vector<128xf32>
    %214 = vector.shape_cast %213 : vector<128xf32> to vector<128x1xf32>
    %215 = vector.broadcast %210 : vector<1x1xf32> to vector<128x1xf32>
    %216 = arith.addf %214, %215 : vector<128x1xf32>
    %217 = vector.extract_strided_slice %1 {offsets = [0, 0], sizes = [16, 32], strides = [1, 1]} : vector<128x32xf32> to vector<16x32xf32>
    %218 = vector.extract_strided_slice %216 {offsets = [0, 0], sizes = [16, 1], strides = [1, 1]} : vector<128x1xf32> to vector<16x1xf32>
    %219 = vector.broadcast %218 : vector<16x1xf32> to vector<16x32xf32>
    %220 = arith.mulf %217, %219 : vector<16x32xf32>
    %221 = vector.extract_strided_slice %1 {offsets = [16, 0], sizes = [16, 32], strides = [1, 1]} : vector<128x32xf32> to vector<16x32xf32>
    %222 = vector.extract_strided_slice %216 {offsets = [16, 0], sizes = [16, 1], strides = [1, 1]} : vector<128x1xf32> to vector<16x1xf32>
    %223 = vector.broadcast %222 : vector<16x1xf32> to vector<16x32xf32>
    %224 = arith.mulf %221, %223 : vector<16x32xf32>
    %225 = arith.addf %220, %224 : vector<16x32xf32>
    %226 = vector.extract_strided_slice %1 {offsets = [32, 0], sizes = [16, 32], strides = [1, 1]} : vector<128x32xf32> to vector<16x32xf32>
    %227 = vector.extract_strided_slice %216 {offsets = [32, 0], sizes = [16, 1], strides = [1, 1]} : vector<128x1xf32> to vector<16x1xf32>
    %228 = vector.broadcast %227 : vector<16x1xf32> to vector<16x32xf32>
    %229 = arith.mulf %226, %228 : vector<16x32xf32>
    %230 = arith.addf %225, %229 : vector<16x32xf32>
    %231 = vector.extract_strided_slice %1 {offsets = [48, 0], sizes = [16, 32], strides = [1, 1]} : vector<128x32xf32> to vector<16x32xf32>
    %232 = vector.extract_strided_slice %216 {offsets = [48, 0], sizes = [16, 1], strides = [1, 1]} : vector<128x1xf32> to vector<16x1xf32>
    %233 = vector.broadcast %232 : vector<16x1xf32> to vector<16x32xf32>
    %234 = arith.mulf %231, %233 : vector<16x32xf32>
    %235 = arith.addf %230, %234 : vector<16x32xf32>
    %236 = vector.extract_strided_slice %1 {offsets = [64, 0], sizes = [16, 32], strides = [1, 1]} : vector<128x32xf32> to vector<16x32xf32>
    %237 = vector.extract_strided_slice %216 {offsets = [64, 0], sizes = [16, 1], strides = [1, 1]} : vector<128x1xf32> to vector<16x1xf32>
    %238 = vector.broadcast %237 : vector<16x1xf32> to vector<16x32xf32>
    %239 = arith.mulf %236, %238 : vector<16x32xf32>
    %240 = arith.addf %235, %239 : vector<16x32xf32>
    %241 = vector.extract_strided_slice %1 {offsets = [80, 0], sizes = [16, 32], strides = [1, 1]} : vector<128x32xf32> to vector<16x32xf32>
    %242 = vector.extract_strided_slice %216 {offsets = [80, 0], sizes = [16, 1], strides = [1, 1]} : vector<128x1xf32> to vector<16x1xf32>
    %243 = vector.broadcast %242 : vector<16x1xf32> to vector<16x32xf32>
    %244 = arith.mulf %241, %243 : vector<16x32xf32>
    %245 = arith.addf %240, %244 : vector<16x32xf32>
    %246 = vector.extract_strided_slice %1 {offsets = [96, 0], sizes = [16, 32], strides = [1, 1]} : vector<128x32xf32> to vector<16x32xf32>
    %247 = vector.extract_strided_slice %216 {offsets = [96, 0], sizes = [16, 1], strides = [1, 1]} : vector<128x1xf32> to vector<16x1xf32>
    %248 = vector.broadcast %247 : vector<16x1xf32> to vector<16x32xf32>
    %249 = arith.mulf %246, %248 : vector<16x32xf32>
    %250 = arith.addf %245, %249 : vector<16x32xf32>
    %251 = vector.extract_strided_slice %1 {offsets = [112, 0], sizes = [16, 32], strides = [1, 1]} : vector<128x32xf32> to vector<16x32xf32>
    %252 = vector.extract_strided_slice %216 {offsets = [112, 0], sizes = [16, 1], strides = [1, 1]} : vector<128x1xf32> to vector<16x1xf32>
    %253 = vector.broadcast %252 : vector<16x1xf32> to vector<16x32xf32>
    %254 = arith.mulf %251, %253 : vector<16x32xf32>
    %255 = arith.addf %250, %254 : vector<16x32xf32>
    %c1 = arith.constant 1 : index
    %c0_33 = arith.constant 0 : index
    %c0_34 = arith.constant 0 : index
    %256 = vector.load %arg2[%c1, %c0_33, %c0_34] : memref<3x64x128xf32, #tpu.memory_space<vmem>>, vector<1x64x128xf32>
    %257 = vector.shape_cast %256 : vector<1x64x128xf32> to vector<64x128xf32>
    %258 = vector.extract_strided_slice %257 {offsets = [0, 0], sizes = [32, 128], strides = [1, 1]} : vector<64x128xf32> to vector<32x128xf32>
    %259 = vector.extract_strided_slice %257 {offsets = [32, 0], sizes = [32, 128], strides = [1, 1]} : vector<64x128xf32> to vector<32x128xf32>
    %c1_35 = arith.constant 1 : index
    %c0_36 = arith.constant 0 : index
    %c0_37 = arith.constant 0 : index
    %260 = vector.load %arg3[%c1_35, %c0_36, %c0_37] : memref<3x32x128xbf16, #tpu.memory_space<vmem>>, vector<1x32x128xbf16>
    %261 = vector.shape_cast %260 : vector<1x32x128xbf16> to vector<32x128xbf16>
    %262 = vector.extract_strided_slice %0 {offsets = [1, 0], sizes = [1, 128], strides = [1, 1]} : vector<12x128xf32> to vector<1x128xf32>
    %263 = vector.extract_strided_slice %255 {offsets = [12, 0], sizes = [4, 32], strides = [1, 1]} : vector<16x32xf32> to vector<4x32xf32>
    %264 = vector.extract_strided_slice %255 {offsets = [8, 0], sizes = [4, 32], strides = [1, 1]} : vector<16x32xf32> to vector<4x32xf32>
    %265 = vector.extract_strided_slice %255 {offsets = [4, 0], sizes = [4, 32], strides = [1, 1]} : vector<16x32xf32> to vector<4x32xf32>
    %266 = vector.extract_strided_slice %255 {offsets = [0, 0], sizes = [4, 32], strides = [1, 1]} : vector<16x32xf32> to vector<4x32xf32>
    %267 = tpu.concatenate %263, %264, %265, %266 in 0 : vector<4x32xf32>, vector<4x32xf32>, vector<4x32xf32>, vector<4x32xf32> -> vector<16x32xf32>
    %cst_38 = arith.constant dense<0.000000e+00> : vector<16x128xf32>
    %268 = tpu.matmul %255, %258, %cst_38 {dimension_numbers = #tpu.dot_dimension_numbers<[1], [0], [0], [1], [0, 0, 1, 1], [], []>} : vector<16x32xf32>, vector<32x128xf32>, vector<16x128xf32> -> vector<16x128xf32>
    %cst_39 = arith.constant dense<0.000000e+00> : vector<16x128xf32>
    %269 = tpu.matmul %267, %259, %cst_39 {dimension_numbers = #tpu.dot_dimension_numbers<[1], [0], [0], [1], [0, 0, 1, 1], [], []>} : vector<16x32xf32>, vector<32x128xf32>, vector<16x128xf32> -> vector<16x128xf32>
    %270 = arith.addf %268, %269 : vector<16x128xf32>
    %271 = vector.broadcast %262 : vector<1x128xf32> to vector<16x128xf32>
    %272 = arith.addf %270, %271 : vector<16x128xf32>
    %cst_40 = arith.constant 0.000000e+00 : f32
    %273 = vector.broadcast %cst_40 : f32 to vector<4x32xf32>
    %cst_41 = arith.constant 0.000000e+00 : f32
    %274 = vector.broadcast %cst_41 : f32 to vector<4x32xf32>
    %275 = vector.extract_strided_slice %272 {offsets = [0, 0], sizes = [4, 128], strides = [1, 1]} : vector<16x128xf32> to vector<4x128xf32>
    %276 = arith.truncf %273 : vector<4x32xf32> to vector<4x32xbf16>
    %cst_42 = arith.constant dense<0.000000e+00> : vector<4x128xf32>
    %277 = tpu.matmul %276, %261, %cst_42 {dimension_numbers = #tpu.dot_dimension_numbers<[1], [0], [0], [1], [0, 0, 1, 1], [], []>} : vector<4x32xbf16>, vector<32x128xbf16>, vector<4x128xf32> -> vector<4x128xf32>
    %278 = arith.addf %275, %277 : vector<4x128xf32>
    %279 = arith.negf %278 : vector<4x128xf32>
    %280 = math.exp %279 : vector<4x128xf32>
    %cst_43 = arith.constant 1.000000e+00 : f32
    %281 = vector.broadcast %cst_43 : f32 to vector<4x128xf32>
    %282 = arith.addf %281, %280 : vector<4x128xf32>
    %283 = arith.divf %281, %282 : vector<4x128xf32>
    %284 = math.tanh %278 : vector<4x128xf32>
    %285 = vector.extract_strided_slice %283 {offsets = [0, 0], sizes = [4, 32], strides = [1, 1]} : vector<4x128xf32> to vector<4x32xf32>
    %286 = vector.extract_strided_slice %283 {offsets = [0, 32], sizes = [4, 32], strides = [1, 1]} : vector<4x128xf32> to vector<4x32xf32>
    %287 = vector.extract_strided_slice %284 {offsets = [0, 64], sizes = [4, 32], strides = [1, 1]} : vector<4x128xf32> to vector<4x32xf32>
    %288 = vector.extract_strided_slice %283 {offsets = [0, 96], sizes = [4, 32], strides = [1, 1]} : vector<4x128xf32> to vector<4x32xf32>
    %289 = arith.mulf %286, %274 : vector<4x32xf32>
    %290 = arith.mulf %285, %287 : vector<4x32xf32>
    %291 = arith.addf %289, %290 : vector<4x32xf32>
    %292 = math.tanh %291 : vector<4x32xf32>
    %293 = arith.mulf %288, %292 : vector<4x32xf32>
    %294 = vector.extract_strided_slice %293 {offsets = [0, 0], sizes = [4, 16], strides = [1, 1]} : vector<4x32xf32> to vector<4x16xf32>
    %295 = vector.extract_strided_slice %293 {offsets = [0, 16], sizes = [4, 16], strides = [1, 1]} : vector<4x32xf32> to vector<4x16xf32>
    %296 = vector.extract_strided_slice %272 {offsets = [4, 0], sizes = [4, 128], strides = [1, 1]} : vector<16x128xf32> to vector<4x128xf32>
    %297 = arith.truncf %293 : vector<4x32xf32> to vector<4x32xbf16>
    %cst_44 = arith.constant dense<0.000000e+00> : vector<4x128xf32>
    %298 = tpu.matmul %297, %261, %cst_44 {dimension_numbers = #tpu.dot_dimension_numbers<[1], [0], [0], [1], [0, 0, 1, 1], [], []>} : vector<4x32xbf16>, vector<32x128xbf16>, vector<4x128xf32> -> vector<4x128xf32>
    %299 = arith.addf %296, %298 : vector<4x128xf32>
    %300 = arith.negf %299 : vector<4x128xf32>
    %301 = math.exp %300 : vector<4x128xf32>
    %cst_45 = arith.constant 1.000000e+00 : f32
    %302 = vector.broadcast %cst_45 : f32 to vector<4x128xf32>
    %303 = arith.addf %302, %301 : vector<4x128xf32>
    %304 = arith.divf %302, %303 : vector<4x128xf32>
    %305 = math.tanh %299 : vector<4x128xf32>
    %306 = vector.extract_strided_slice %304 {offsets = [0, 0], sizes = [4, 32], strides = [1, 1]} : vector<4x128xf32> to vector<4x32xf32>
    %307 = vector.extract_strided_slice %304 {offsets = [0, 32], sizes = [4, 32], strides = [1, 1]} : vector<4x128xf32> to vector<4x32xf32>
    %308 = vector.extract_strided_slice %305 {offsets = [0, 64], sizes = [4, 32], strides = [1, 1]} : vector<4x128xf32> to vector<4x32xf32>
    %309 = vector.extract_strided_slice %304 {offsets = [0, 96], sizes = [4, 32], strides = [1, 1]} : vector<4x128xf32> to vector<4x32xf32>
    %310 = arith.mulf %307, %291 : vector<4x32xf32>
    %311 = arith.mulf %306, %308 : vector<4x32xf32>
    %312 = arith.addf %310, %311 : vector<4x32xf32>
    %313 = math.tanh %312 : vector<4x32xf32>
    %314 = arith.mulf %309, %313 : vector<4x32xf32>
    %315 = vector.extract_strided_slice %314 {offsets = [0, 0], sizes = [4, 16], strides = [1, 1]} : vector<4x32xf32> to vector<4x16xf32>
    %316 = vector.extract_strided_slice %314 {offsets = [0, 16], sizes = [4, 16], strides = [1, 1]} : vector<4x32xf32> to vector<4x16xf32>
    %317 = vector.extract_strided_slice %272 {offsets = [8, 0], sizes = [4, 128], strides = [1, 1]} : vector<16x128xf32> to vector<4x128xf32>
    %318 = arith.truncf %314 : vector<4x32xf32> to vector<4x32xbf16>
    %cst_46 = arith.constant dense<0.000000e+00> : vector<4x128xf32>
    %319 = tpu.matmul %318, %261, %cst_46 {dimension_numbers = #tpu.dot_dimension_numbers<[1], [0], [0], [1], [0, 0, 1, 1], [], []>} : vector<4x32xbf16>, vector<32x128xbf16>, vector<4x128xf32> -> vector<4x128xf32>
    %320 = arith.addf %317, %319 : vector<4x128xf32>
    %321 = arith.negf %320 : vector<4x128xf32>
    %322 = math.exp %321 : vector<4x128xf32>
    %cst_47 = arith.constant 1.000000e+00 : f32
    %323 = vector.broadcast %cst_47 : f32 to vector<4x128xf32>
    %324 = arith.addf %323, %322 : vector<4x128xf32>
    %325 = arith.divf %323, %324 : vector<4x128xf32>
    %326 = math.tanh %320 : vector<4x128xf32>
    %327 = vector.extract_strided_slice %325 {offsets = [0, 0], sizes = [4, 32], strides = [1, 1]} : vector<4x128xf32> to vector<4x32xf32>
    %328 = vector.extract_strided_slice %325 {offsets = [0, 32], sizes = [4, 32], strides = [1, 1]} : vector<4x128xf32> to vector<4x32xf32>
    %329 = vector.extract_strided_slice %326 {offsets = [0, 64], sizes = [4, 32], strides = [1, 1]} : vector<4x128xf32> to vector<4x32xf32>
    %330 = vector.extract_strided_slice %325 {offsets = [0, 96], sizes = [4, 32], strides = [1, 1]} : vector<4x128xf32> to vector<4x32xf32>
    %331 = arith.mulf %328, %312 : vector<4x32xf32>
    %332 = arith.mulf %327, %329 : vector<4x32xf32>
    %333 = arith.addf %331, %332 : vector<4x32xf32>
    %334 = math.tanh %333 : vector<4x32xf32>
    %335 = arith.mulf %330, %334 : vector<4x32xf32>
    %336 = vector.extract_strided_slice %335 {offsets = [0, 0], sizes = [4, 16], strides = [1, 1]} : vector<4x32xf32> to vector<4x16xf32>
    %337 = vector.extract_strided_slice %335 {offsets = [0, 16], sizes = [4, 16], strides = [1, 1]} : vector<4x32xf32> to vector<4x16xf32>
    %338 = vector.extract_strided_slice %272 {offsets = [12, 0], sizes = [4, 128], strides = [1, 1]} : vector<16x128xf32> to vector<4x128xf32>
    %339 = arith.truncf %335 : vector<4x32xf32> to vector<4x32xbf16>
    %cst_48 = arith.constant dense<0.000000e+00> : vector<4x128xf32>
    %340 = tpu.matmul %339, %261, %cst_48 {dimension_numbers = #tpu.dot_dimension_numbers<[1], [0], [0], [1], [0, 0, 1, 1], [], []>} : vector<4x32xbf16>, vector<32x128xbf16>, vector<4x128xf32> -> vector<4x128xf32>
    %341 = arith.addf %338, %340 : vector<4x128xf32>
    %342 = arith.negf %341 : vector<4x128xf32>
    %343 = math.exp %342 : vector<4x128xf32>
    %cst_49 = arith.constant 1.000000e+00 : f32
    %344 = vector.broadcast %cst_49 : f32 to vector<4x128xf32>
    %345 = arith.addf %344, %343 : vector<4x128xf32>
    %346 = arith.divf %344, %345 : vector<4x128xf32>
    %347 = math.tanh %341 : vector<4x128xf32>
    %348 = vector.extract_strided_slice %346 {offsets = [0, 0], sizes = [4, 32], strides = [1, 1]} : vector<4x128xf32> to vector<4x32xf32>
    %349 = vector.extract_strided_slice %346 {offsets = [0, 32], sizes = [4, 32], strides = [1, 1]} : vector<4x128xf32> to vector<4x32xf32>
    %350 = vector.extract_strided_slice %347 {offsets = [0, 64], sizes = [4, 32], strides = [1, 1]} : vector<4x128xf32> to vector<4x32xf32>
    %351 = vector.extract_strided_slice %346 {offsets = [0, 96], sizes = [4, 32], strides = [1, 1]} : vector<4x128xf32> to vector<4x32xf32>
    %352 = arith.mulf %349, %333 : vector<4x32xf32>
    %353 = arith.mulf %348, %350 : vector<4x32xf32>
    %354 = arith.addf %352, %353 : vector<4x32xf32>
    %355 = math.tanh %354 : vector<4x32xf32>
    %356 = arith.mulf %351, %355 : vector<4x32xf32>
    %357 = vector.extract_strided_slice %356 {offsets = [0, 0], sizes = [4, 16], strides = [1, 1]} : vector<4x32xf32> to vector<4x16xf32>
    %358 = vector.extract_strided_slice %356 {offsets = [0, 16], sizes = [4, 16], strides = [1, 1]} : vector<4x32xf32> to vector<4x16xf32>
    %359 = tpu.concatenate %294, %358 in 1 : vector<4x16xf32>, vector<4x16xf32> -> vector<4x32xf32>
    %360 = tpu.concatenate %315, %337 in 1 : vector<4x16xf32>, vector<4x16xf32> -> vector<4x32xf32>
    %361 = tpu.concatenate %336, %316 in 1 : vector<4x16xf32>, vector<4x16xf32> -> vector<4x32xf32>
    %362 = tpu.concatenate %357, %295 in 1 : vector<4x16xf32>, vector<4x16xf32> -> vector<4x32xf32>
    %363 = tpu.concatenate %359, %360, %361, %362 in 0 : vector<4x32xf32>, vector<4x32xf32>, vector<4x32xf32>, vector<4x32xf32> -> vector<16x32xf32>
    %364 = vector.extract_strided_slice %0 {offsets = [5, 0], sizes = [1, 32], strides = [1, 1]} : vector<12x128xf32> to vector<1x32xf32>
    %365 = vector.extract_strided_slice %0 {offsets = [10, 0], sizes = [1, 1], strides = [1, 1]} : vector<12x128xf32> to vector<1x1xf32>
    %366 = vector.broadcast %364 : vector<1x32xf32> to vector<16x32xf32>
    %367 = arith.mulf %363, %366 : vector<16x32xf32>
    %cst_50 = arith.constant dense<0.000000e+00> : vector<16xf32>
    %368 = vector.multi_reduction <add>, %367, %cst_50 [1] : vector<16x32xf32> to vector<16xf32>
    %369 = vector.shape_cast %368 : vector<16xf32> to vector<16x1xf32>
    %370 = vector.broadcast %365 : vector<1x1xf32> to vector<16x1xf32>
    %371 = arith.addf %369, %370 : vector<16x1xf32>
    %372 = vector.extract_strided_slice %255 {offsets = [0, 0], sizes = [4, 32], strides = [1, 1]} : vector<16x32xf32> to vector<4x32xf32>
    %373 = vector.extract_strided_slice %371 {offsets = [0, 0], sizes = [4, 1], strides = [1, 1]} : vector<16x1xf32> to vector<4x1xf32>
    %374 = vector.broadcast %373 : vector<4x1xf32> to vector<4x32xf32>
    %375 = arith.mulf %372, %374 : vector<4x32xf32>
    %376 = vector.extract_strided_slice %255 {offsets = [4, 0], sizes = [4, 32], strides = [1, 1]} : vector<16x32xf32> to vector<4x32xf32>
    %377 = vector.extract_strided_slice %371 {offsets = [4, 0], sizes = [4, 1], strides = [1, 1]} : vector<16x1xf32> to vector<4x1xf32>
    %378 = vector.broadcast %377 : vector<4x1xf32> to vector<4x32xf32>
    %379 = arith.mulf %376, %378 : vector<4x32xf32>
    %380 = arith.addf %375, %379 : vector<4x32xf32>
    %381 = vector.extract_strided_slice %255 {offsets = [8, 0], sizes = [4, 32], strides = [1, 1]} : vector<16x32xf32> to vector<4x32xf32>
    %382 = vector.extract_strided_slice %371 {offsets = [8, 0], sizes = [4, 1], strides = [1, 1]} : vector<16x1xf32> to vector<4x1xf32>
    %383 = vector.broadcast %382 : vector<4x1xf32> to vector<4x32xf32>
    %384 = arith.mulf %381, %383 : vector<4x32xf32>
    %385 = arith.addf %380, %384 : vector<4x32xf32>
    %386 = vector.extract_strided_slice %255 {offsets = [12, 0], sizes = [4, 32], strides = [1, 1]} : vector<16x32xf32> to vector<4x32xf32>
    %387 = vector.extract_strided_slice %371 {offsets = [12, 0], sizes = [4, 1], strides = [1, 1]} : vector<16x1xf32> to vector<4x1xf32>
    %388 = vector.broadcast %387 : vector<4x1xf32> to vector<4x32xf32>
    %389 = arith.mulf %386, %388 : vector<4x32xf32>
    %390 = arith.addf %385, %389 : vector<4x32xf32>
    %c2 = arith.constant 2 : index
    %c0_51 = arith.constant 0 : index
    %c0_52 = arith.constant 0 : index
    %391 = vector.load %arg2[%c2, %c0_51, %c0_52] : memref<3x64x128xf32, #tpu.memory_space<vmem>>, vector<1x64x128xf32>
    %392 = vector.shape_cast %391 : vector<1x64x128xf32> to vector<64x128xf32>
    %393 = vector.extract_strided_slice %392 {offsets = [0, 0], sizes = [32, 128], strides = [1, 1]} : vector<64x128xf32> to vector<32x128xf32>
    %394 = vector.extract_strided_slice %392 {offsets = [32, 0], sizes = [32, 128], strides = [1, 1]} : vector<64x128xf32> to vector<32x128xf32>
    %c2_53 = arith.constant 2 : index
    %c0_54 = arith.constant 0 : index
    %c0_55 = arith.constant 0 : index
    %395 = vector.load %arg3[%c2_53, %c0_54, %c0_55] : memref<3x32x128xbf16, #tpu.memory_space<vmem>>, vector<1x32x128xbf16>
    %396 = vector.shape_cast %395 : vector<1x32x128xbf16> to vector<32x128xbf16>
    %397 = vector.extract_strided_slice %0 {offsets = [2, 0], sizes = [1, 128], strides = [1, 1]} : vector<12x128xf32> to vector<1x128xf32>
    %398 = vector.extract_strided_slice %390 {offsets = [2, 0], sizes = [2, 32], strides = [1, 1]} : vector<4x32xf32> to vector<2x32xf32>
    %399 = vector.extract_strided_slice %390 {offsets = [0, 0], sizes = [2, 32], strides = [1, 1]} : vector<4x32xf32> to vector<2x32xf32>
    %400 = tpu.concatenate %398, %399 in 0 : vector<2x32xf32>, vector<2x32xf32> -> vector<4x32xf32>
    %cst_56 = arith.constant dense<0.000000e+00> : vector<4x128xf32>
    %401 = tpu.matmul %390, %393, %cst_56 {dimension_numbers = #tpu.dot_dimension_numbers<[1], [0], [0], [1], [0, 0, 1, 1], [], []>} : vector<4x32xf32>, vector<32x128xf32>, vector<4x128xf32> -> vector<4x128xf32>
    %cst_57 = arith.constant dense<0.000000e+00> : vector<4x128xf32>
    %402 = tpu.matmul %400, %394, %cst_57 {dimension_numbers = #tpu.dot_dimension_numbers<[1], [0], [0], [1], [0, 0, 1, 1], [], []>} : vector<4x32xf32>, vector<32x128xf32>, vector<4x128xf32> -> vector<4x128xf32>
    %403 = arith.addf %401, %402 : vector<4x128xf32>
    %404 = vector.broadcast %397 : vector<1x128xf32> to vector<4x128xf32>
    %405 = arith.addf %403, %404 : vector<4x128xf32>
    %cst_58 = arith.constant 0.000000e+00 : f32
    %406 = vector.broadcast %cst_58 : f32 to vector<2x32xf32>
    %cst_59 = arith.constant 0.000000e+00 : f32
    %407 = vector.broadcast %cst_59 : f32 to vector<2x32xf32>
    %408 = vector.extract_strided_slice %405 {offsets = [0, 0], sizes = [2, 128], strides = [1, 1]} : vector<4x128xf32> to vector<2x128xf32>
    %409 = arith.truncf %406 : vector<2x32xf32> to vector<2x32xbf16>
    %cst_60 = arith.constant dense<0.000000e+00> : vector<2x128xf32>
    %410 = tpu.matmul %409, %396, %cst_60 {dimension_numbers = #tpu.dot_dimension_numbers<[1], [0], [0], [1], [0, 0, 1, 1], [], []>} : vector<2x32xbf16>, vector<32x128xbf16>, vector<2x128xf32> -> vector<2x128xf32>
    %411 = arith.addf %408, %410 : vector<2x128xf32>
    %412 = arith.negf %411 : vector<2x128xf32>
    %413 = math.exp %412 : vector<2x128xf32>
    %cst_61 = arith.constant 1.000000e+00 : f32
    %414 = vector.broadcast %cst_61 : f32 to vector<2x128xf32>
    %415 = arith.addf %414, %413 : vector<2x128xf32>
    %416 = arith.divf %414, %415 : vector<2x128xf32>
    %417 = math.tanh %411 : vector<2x128xf32>
    %418 = vector.extract_strided_slice %416 {offsets = [0, 0], sizes = [2, 32], strides = [1, 1]} : vector<2x128xf32> to vector<2x32xf32>
    %419 = vector.extract_strided_slice %416 {offsets = [0, 32], sizes = [2, 32], strides = [1, 1]} : vector<2x128xf32> to vector<2x32xf32>
    %420 = vector.extract_strided_slice %417 {offsets = [0, 64], sizes = [2, 32], strides = [1, 1]} : vector<2x128xf32> to vector<2x32xf32>
    %421 = vector.extract_strided_slice %416 {offsets = [0, 96], sizes = [2, 32], strides = [1, 1]} : vector<2x128xf32> to vector<2x32xf32>
    %422 = arith.mulf %419, %407 : vector<2x32xf32>
    %423 = arith.mulf %418, %420 : vector<2x32xf32>
    %424 = arith.addf %422, %423 : vector<2x32xf32>
    %425 = math.tanh %424 : vector<2x32xf32>
    %426 = arith.mulf %421, %425 : vector<2x32xf32>
    %427 = vector.extract_strided_slice %426 {offsets = [0, 0], sizes = [2, 16], strides = [1, 1]} : vector<2x32xf32> to vector<2x16xf32>
    %428 = vector.extract_strided_slice %426 {offsets = [0, 16], sizes = [2, 16], strides = [1, 1]} : vector<2x32xf32> to vector<2x16xf32>
    %429 = vector.extract_strided_slice %405 {offsets = [2, 0], sizes = [2, 128], strides = [1, 1]} : vector<4x128xf32> to vector<2x128xf32>
    %430 = arith.truncf %426 : vector<2x32xf32> to vector<2x32xbf16>
    %cst_62 = arith.constant dense<0.000000e+00> : vector<2x128xf32>
    %431 = tpu.matmul %430, %396, %cst_62 {dimension_numbers = #tpu.dot_dimension_numbers<[1], [0], [0], [1], [0, 0, 1, 1], [], []>} : vector<2x32xbf16>, vector<32x128xbf16>, vector<2x128xf32> -> vector<2x128xf32>
    %432 = arith.addf %429, %431 : vector<2x128xf32>
    %433 = arith.negf %432 : vector<2x128xf32>
    %434 = math.exp %433 : vector<2x128xf32>
    %cst_63 = arith.constant 1.000000e+00 : f32
    %435 = vector.broadcast %cst_63 : f32 to vector<2x128xf32>
    %436 = arith.addf %435, %434 : vector<2x128xf32>
    %437 = arith.divf %435, %436 : vector<2x128xf32>
    %438 = math.tanh %432 : vector<2x128xf32>
    %439 = vector.extract_strided_slice %437 {offsets = [0, 0], sizes = [2, 32], strides = [1, 1]} : vector<2x128xf32> to vector<2x32xf32>
    %440 = vector.extract_strided_slice %437 {offsets = [0, 32], sizes = [2, 32], strides = [1, 1]} : vector<2x128xf32> to vector<2x32xf32>
    %441 = vector.extract_strided_slice %438 {offsets = [0, 64], sizes = [2, 32], strides = [1, 1]} : vector<2x128xf32> to vector<2x32xf32>
    %442 = vector.extract_strided_slice %437 {offsets = [0, 96], sizes = [2, 32], strides = [1, 1]} : vector<2x128xf32> to vector<2x32xf32>
    %443 = arith.mulf %440, %424 : vector<2x32xf32>
    %444 = arith.mulf %439, %441 : vector<2x32xf32>
    %445 = arith.addf %443, %444 : vector<2x32xf32>
    %446 = math.tanh %445 : vector<2x32xf32>
    %447 = arith.mulf %442, %446 : vector<2x32xf32>
    %448 = vector.extract_strided_slice %447 {offsets = [0, 0], sizes = [2, 16], strides = [1, 1]} : vector<2x32xf32> to vector<2x16xf32>
    %449 = vector.extract_strided_slice %447 {offsets = [0, 16], sizes = [2, 16], strides = [1, 1]} : vector<2x32xf32> to vector<2x16xf32>
    %450 = tpu.concatenate %427, %449 in 1 : vector<2x16xf32>, vector<2x16xf32> -> vector<2x32xf32>
    %451 = tpu.concatenate %448, %428 in 1 : vector<2x16xf32>, vector<2x16xf32> -> vector<2x32xf32>
    %452 = tpu.concatenate %450, %451 in 0 : vector<2x32xf32>, vector<2x32xf32> -> vector<4x32xf32>
    %453 = vector.extract_strided_slice %0 {offsets = [6, 0], sizes = [1, 32], strides = [1, 1]} : vector<12x128xf32> to vector<1x32xf32>
    %454 = vector.extract_strided_slice %0 {offsets = [11, 0], sizes = [1, 1], strides = [1, 1]} : vector<12x128xf32> to vector<1x1xf32>
    %455 = vector.broadcast %453 : vector<1x32xf32> to vector<4x32xf32>
    %456 = arith.mulf %452, %455 : vector<4x32xf32>
    %cst_64 = arith.constant dense<0.000000e+00> : vector<4xf32>
    %457 = vector.multi_reduction <add>, %456, %cst_64 [1] : vector<4x32xf32> to vector<4xf32>
    %458 = vector.shape_cast %457 : vector<4xf32> to vector<4x1xf32>
    %459 = vector.broadcast %454 : vector<1x1xf32> to vector<4x1xf32>
    %460 = arith.addf %458, %459 : vector<4x1xf32>
    %461 = vector.extract_strided_slice %390 {offsets = [0, 0], sizes = [2, 32], strides = [1, 1]} : vector<4x32xf32> to vector<2x32xf32>
    %462 = vector.extract_strided_slice %460 {offsets = [0, 0], sizes = [2, 1], strides = [1, 1]} : vector<4x1xf32> to vector<2x1xf32>
    %463 = vector.broadcast %462 : vector<2x1xf32> to vector<2x32xf32>
    %464 = arith.mulf %461, %463 : vector<2x32xf32>
    %465 = vector.extract_strided_slice %390 {offsets = [2, 0], sizes = [2, 32], strides = [1, 1]} : vector<4x32xf32> to vector<2x32xf32>
    %466 = vector.extract_strided_slice %460 {offsets = [2, 0], sizes = [2, 1], strides = [1, 1]} : vector<4x1xf32> to vector<2x1xf32>
    %467 = vector.broadcast %466 : vector<2x1xf32> to vector<2x32xf32>
    %468 = arith.mulf %465, %467 : vector<2x32xf32>
    %469 = arith.addf %464, %468 : vector<2x32xf32>
    %c32 = arith.constant 32 : index
    %c0_65 = arith.constant 0 : index
    %470 = vector.load %arg4[%c32, %c0_65] : memref<96x32xf32, #tpu.memory_space<vmem>>, vector<32x32xf32>
    %cst_66 = arith.constant dense<0.000000e+00> : vector<2x32xf32>
    %471 = tpu.matmul %469, %470, %cst_66 {dimension_numbers = #tpu.dot_dimension_numbers<[1], [0], [0], [1], [0, 0, 1, 1], [], []>} : vector<2x32xf32>, vector<32x32xf32>, vector<2x32xf32> -> vector<2x32xf32>
    %472 = vector.extract_strided_slice %0 {offsets = [7, 0], sizes = [1, 32], strides = [1, 1]} : vector<12x128xf32> to vector<1x32xf32>
    %473 = vector.broadcast %472 : vector<1x32xf32> to vector<2x32xf32>
    %474 = arith.addf %471, %473 : vector<2x32xf32>
    %cst_67 = arith.constant 0.000000e+00 : f32
    %475 = vector.broadcast %cst_67 : f32 to vector<2x32xf32>
    %476 = arith.maximumf %474, %475 : vector<2x32xf32>
    %c64 = arith.constant 64 : index
    %c0_68 = arith.constant 0 : index
    %477 = vector.load %arg4[%c64, %c0_68] : memref<96x32xf32, #tpu.memory_space<vmem>>, vector<32x4xf32>
    %cst_69 = arith.constant dense<0.000000e+00> : vector<2x4xf32>
    %478 = tpu.matmul %476, %477, %cst_69 {dimension_numbers = #tpu.dot_dimension_numbers<[1], [0], [0], [1], [0, 0, 1, 1], [], []>} : vector<2x32xf32>, vector<32x4xf32>, vector<2x4xf32> -> vector<2x4xf32>
    %479 = vector.extract_strided_slice %0 {offsets = [8, 0], sizes = [1, 4], strides = [1, 1]} : vector<12x128xf32> to vector<1x4xf32>
    %480 = vector.broadcast %479 : vector<1x4xf32> to vector<2x4xf32>
    %481 = arith.addf %478, %480 : vector<2x4xf32>
    %cst_70 = arith.constant dense<0xFF800000> : vector<2xf32>
    %482 = vector.multi_reduction <maximumf>, %481, %cst_70 [1] : vector<2x4xf32> to vector<2xf32>
    %483 = vector.shape_cast %482 : vector<2xf32> to vector<2x1xf32>
    %484 = vector.broadcast %483 : vector<2x1xf32> to vector<2x4xf32>
    %485 = arith.subf %481, %484 : vector<2x4xf32>
    %486 = math.exp %485 : vector<2x4xf32>
    %cst_71 = arith.constant dense<0.000000e+00> : vector<2xf32>
    %487 = vector.multi_reduction <add>, %486, %cst_71 [1] : vector<2x4xf32> to vector<2xf32>
    %488 = vector.shape_cast %487 : vector<2xf32> to vector<2x1xf32>
    %489 = vector.broadcast %488 : vector<2x1xf32> to vector<2x4xf32>
    %490 = arith.divf %486, %489 : vector<2x4xf32>
    %c0_72 = arith.constant 0 : index
    %c0_73 = arith.constant 0 : index
    %491 = vector.load %arg6[%c0_72, %c0_73] : memref<2x4xf32, #tpu.memory_space<vmem>>, vector<2x4xf32>
    tpu.vector_store %arg6[%c0_72, %c0_73], %490 {strides = array<i32>} : memref<2x4xf32, #tpu.memory_space<vmem>>, vector<2x4xf32>,
    return
  }
  func.func @transform_0(%arg0: i32) -> (i32, i32) {
    %c0_i32 = arith.constant 0 : i32
    %c0_i32_0 = arith.constant 0 : i32
    %c0_i32_1 = arith.constant 0 : i32
    return %c0_i32, %c0_i32_0 : i32, i32
  }
  func.func @transform_1(%arg0: i32) -> (i32, i32, i32) {
    %c0_i32 = arith.constant 0 : i32
    %c0_i32_0 = arith.constant 0 : i32
    %c0_i32_1 = arith.constant 0 : i32
    %c0_i32_2 = arith.constant 0 : i32
    return %c0_i32, %c0_i32_0, %c0_i32_1 : i32, i32, i32
  }
  func.func @transform_2(%arg0: i32) -> (i32, i32, i32) {
    %c0_i32 = arith.constant 0 : i32
    %c0_i32_0 = arith.constant 0 : i32
    %c0_i32_1 = arith.constant 0 : i32
    %c0_i32_2 = arith.constant 0 : i32
    return %c0_i32, %c0_i32_0, %c0_i32_1 : i32, i32, i32
  }
  func.func @transform_3(%arg0: i32) -> (i32, i32) {
    %c0_i32 = arith.constant 0 : i32
    %c0_i32_0 = arith.constant 0 : i32
    %c0_i32_1 = arith.constant 0 : i32
    return %c0_i32, %c0_i32_0 : i32, i32
  }
  func.func @transform_4(%arg0: i32) -> (i32, i32) {
    %c0_i32 = arith.constant 0 : i32
    %c0_i32_0 = arith.constant 0 : i32
    %c0_i32_1 = arith.constant 0 : i32
    return %c0_i32, %c0_i32_0 : i32, i32
  }
  func.func @transform_5(%arg0: i32) -> (i32, i32) {
    %c0_i32 = arith.constant 0 : i32
    %c0_i32_0 = arith.constant 0 : i32
    %c0_i32_1 = arith.constant 0 : i32
    return %c0_i32, %c0_i32_0 : i32, i32
  }
}

</mosaic_0001>

<llo_original>
// kernel: tpu_custom_call.1
$region0: #{tpu_custom_call.1}
  #allocation0 [shape = 'u32[]', space=smem, size = 0x4, offset = 0x4, fixed_abs, tag = 'smem constant byte address 0x4 - core index']
  #allocation1 [shape = 'u32[72,128]{1,0:T(1,128)}', space=vmem, size = 0x9000, scoped, tag = 'internal scratch']
  %s0 = inlined_call_operand.vmem [shape: f32[128,32], index: 0, kind: input, shape index: {}]
  %s1 = inlined_call_operand.vmem [shape: f32[3,64,128], index: 1, kind: input, shape index: {}]
  %s2 = inlined_call_operand.vmem [shape: bf16[3,32,128], index: 2, kind: input, shape index: {}]
  %s3 = inlined_call_operand.vmem [shape: f32[96,32], index: 3, kind: input, shape index: {}]
  %s4 = inlined_call_operand.vmem [shape: f32[12,128], index: 4, kind: input, shape index: {}]
  %s5 = inlined_call_operand.hbm [shape: f32[2,4], index: 5, kind: output, shape index: {}]
  %s6 = sld [smem:[#allocation0]]
  $region30: #{tpu_custom_call.1} parent=0
    _
  %s8 = ssub.s32 1, %s6
  %s9 = scalar_select 0, %s8, %s6
  $region1: #{tpu_custom_call.1} parent=0
    #allocation2 [shape = 'u8[1024]{0}', space=vmem, size = 0x400, scoped, tag = 'output window, operand 0, single buffered']
    #allocation3 [shape = 's32[1]{0}', space=sflag, size = 0x4, scoped, tag = 'scoped memory for tpu_custom_call.1']
    %10 = vsyncpa [#allocation3], 0
    // Predicated region
    $region2: #{tpu_custom_call.1} parent=1 // pred_check
      _
    $region3: #{tpu_custom_call.1} parent=1 // pred_check_branch
      %12 = sbr.rel (0) target = $region5
    $region4: #{tpu_custom_call.1} parent=1 // pred_region
      _
    $region5: #{tpu_custom_call.1} parent=1 // pred_fallthru
      _
    // Predicated region
    $region6: #{tpu_custom_call.1} parent=1 // pred_check
      _
    $region7: #{tpu_custom_call.1} parent=1 // pred_check_branch
      %14 = sbr.rel (0) target = $region9
    $region8: #{tpu_custom_call.1} parent=1 // pred_region
      _
    $region9: #{tpu_custom_call.1} parent=1 // pred_fallthru
      _
    // Predicated region
    $region10: #{tpu_custom_call.1} parent=1 // pred_check
      _
    $region11: #{tpu_custom_call.1} parent=1 // pred_check_branch
      %16 = sbr.rel (0) target = $region13
    $region12: #{tpu_custom_call.1} parent=1 // pred_region
      _
    $region13: #{tpu_custom_call.1} parent=1 // pred_fallthru
      _
    // Predicated region
    $region14: #{tpu_custom_call.1} parent=1 // pred_check
      _
    $region15: #{tpu_custom_call.1} parent=1 // pred_check_branch
      %18 = sbr.rel (0) target = $region17
    $region16: #{tpu_custom_call.1} parent=1 // pred_region
      _
    $region17: #{tpu_custom_call.1} parent=1 // pred_fallthru
      _
    // Predicated region
    $region18: #{tpu_custom_call.1} parent=1 // pred_check
      _
    $region19: #{tpu_custom_call.1} parent=1 // pred_check_branch
      %20 = sbr.rel (0) target = $region21
    $region20: #{tpu_custom_call.1} parent=1 // pred_region
      _
    $region21: #{tpu_custom_call.1} parent=1 // pred_fallthru
      _
    %v22 = vld [vmem:[%s4] sm:$0xff]
    %v23 = vld [vmem:[%s4 + $0x8] sm:$0xf]
    %v24 = vld [vmem:[%s0] sm:$0xff]
    %v25 = vld [vmem:[%s0 + $0x8] sm:$0xff]
    %v26 = vld [vmem:[%s0 + $0x10] sm:$0xff]
    %v27 = vld [vmem:[%s0 + $0x18] sm:$0xff]
    %v28 = vld [vmem:[%s0 + $0x20] sm:$0xff]
    %v29 = vld [vmem:[%s0 + $0x28] sm:$0xff]
    %v30 = vld [vmem:[%s0 + $0x30] sm:$0xff]
    %v31 = vld [vmem:[%s0 + $0x38] sm:$0xff]
    %v32 = vld [vmem:[%s0 + $0x40] sm:$0xff]
    %v33 = vld [vmem:[%s0 + $0x48] sm:$0xff]
    %v34 = vld [vmem:[%s0 + $0x50] sm:$0xff]
    %v35 = vld [vmem:[%s0 + $0x58] sm:$0xff]
    %v36 = vld [vmem:[%s0 + $0x60] sm:$0xff]
    %v37 = vld [vmem:[%s0 + $0x68] sm:$0xff]
    %v38 = vld [vmem:[%s0 + $0x70] sm:$0xff]
    %v39 = vld [vmem:[%s0 + $0x78] sm:$0xff]
    %v40 = vld [vmem:[%s1] sm:$0xff]
    %v41 = vld [vmem:[%s1 + $0x8] sm:$0xff]
    %v42 = vld [vmem:[%s1 + $0x10] sm:$0xff]
    %v43 = vld [vmem:[%s1 + $0x18] sm:$0xff]
    %v44 = vld [vmem:[%s1 + $0x20] sm:$0xff]
    %v45 = vld [vmem:[%s1 + $0x28] sm:$0xff]
    %v46 = vld [vmem:[%s1 + $0x30] sm:$0xff]
    %v47 = vld [vmem:[%s1 + $0x38] sm:$0xff]
    %v48 = vld [vmem:[%s2] sm:$0xf]
    %v49 = vld [vmem:[%s2 + $0x4] sm:$0xf]
    %v50 = vld [vmem:[%s2 + $0x8] sm:$0xf]
    %v51 = vld [vmem:[%s2 + $0xc] sm:$0xf]
    %vm52 = vcmask 261120
    %v54 = vsel %vm52, %v38, 0
    %v57 = vsel %vm52, %v39, 0
    %v60 = vsel %vm52, %v36, 0
    %v63 = vsel %vm52, %v37, 0
    %v66 = vsel %vm52, %v34, 0
    %v69 = vsel %vm52, %v35, 0
    %v72 = vsel %vm52, %v32, 0
    %v75 = vsel %vm52, %v33, 0
    %v78 = vsel %vm52, %v30, 0
    %v81 = vsel %vm52, %v31, 0
    %v84 = vsel %vm52, %v28, 0
    %v87 = vsel %vm52, %v29, 0
    %v90 = vsel %vm52, %v26, 0
    %v93 = vsel %vm52, %v27, 0
    %v96 = vsel %vm52, %v24, 0
    %v99 = vsel %vm52, %v25, 0
    %101 = vmatpush.msra.mxu0 0.0
    %102 = vmatpush.msra.mxu0 0.0
    %103 = vmatpush.msra.mxu0 0.0
    %104 = vmatpush.msra.mxu0 0.0
    %105 = vmatpush.msra.mxu0 0.0
    %106 = vmatpush.msra.mxu0 0.0
    %107 = vmatpush.msra.mxu0 0.0
    %108 = vmatpush.msra.mxu0 0.0
    %109 = vmatpush.msra.mxu0 0.0
    %110 = vmatpush.msra.mxu0 0.0
    %111 = vmatpush.msra.mxu0 0.0
    %112 = vmatpush.msra.mxu0 0.0
    %113 = vmatpush.msra.mxu0 %v47
    %114 = vmatpush.msra.mxu0 %v46
    %115 = vmatpush.msra.mxu0 %v45
    %116 = vmatpush.msra.mxu0 %v44
    %117 = vmatmul.f32.gmra.mxu0 %v54
    %v118 = vpop.f32.mrf.mxu0
    %v119 = vadd.f32 0.0, %v118
    %120 = vmatmul.f32.gmra.mxu0 %v57
    %v121 = vpop.f32.mrf.mxu0
    %v122 = vadd.f32 0.0, %v121
    %123 = vmatmul.f32.gmra.mxu0 %v60
    %v124 = vpop.f32.mrf.mxu0
    %v125 = vadd.f32 0.0, %v124
    %126 = vmatmul.f32.gmra.mxu0 %v63
    %v127 = vpop.f32.mrf.mxu0
    %v128 = vadd.f32 0.0, %v127
    %129 = vmatmul.f32.gmra.mxu0 %v66
    %v130 = vpop.f32.mrf.mxu0
    %v131 = vadd.f32 0.0, %v130
    %132 = vmatmul.f32.gmra.mxu0 %v69
    %v133 = vpop.f32.mrf.mxu0
    %v134 = vadd.f32 0.0, %v133
    %135 = vmatmul.f32.gmra.mxu0 %v72
    %v136 = vpop.f32.mrf.mxu0
    %v137 = vadd.f32 0.0, %v136
    %138 = vmatmul.f32.gmra.mxu0 %v75
    %v139 = vpop.f32.mrf.mxu0
    %v140 = vadd.f32 0.0, %v139
    %141 = vmatmul.f32.gmra.mxu0 %v78
    %v142 = vpop.f32.mrf.mxu0
    %v143 = vadd.f32 0.0, %v142
    %144 = vmatmul.f32.gmra.mxu0 %v81
    %v145 = vpop.f32.mrf.mxu0
    %v146 = vadd.f32 0.0, %v145
    %147 = vmatmul.f32.gmra.mxu0 %v84
    %v148 = vpop.f32.mrf.mxu0
    %v149 = vadd.f32 0.0, %v148
    %150 = vmatmul.f32.gmra.mxu0 %v87
    %v151 = vpop.f32.mrf.mxu0
    %v152 = vadd.f32 0.0, %v151
    %153 = vmatmul.f32.gmra.mxu0 %v90
    %v154 = vpop.f32.mrf.mxu0
    %v155 = vadd.f32 0.0, %v154
    %156 = vmatmul.f32.gmra.mxu0 %v93
    %v157 = vpop.f32.mrf.mxu0
    %v158 = vadd.f32 0.0, %v157
    %159 = vmatmul.f32.gmra.mxu0 %v96
    %v160 = vpop.f32.mrf.mxu0
    %v161 = vadd.f32 0.0, %v160
    %162 = vmatmul.f32.gmra.mxu0 %v99
    %v163 = vpop.f32.mrf.mxu0
    %v164 = vadd.f32 0.0, %v163
    %165 = vdwg.mxu0
    %166 = vmatpush.msra.mxu0 0.0
    %167 = vmatpush.msra.mxu0 0.0
    %168 = vmatpush.msra.mxu0 0.0
    %169 = vmatpush.msra.mxu0 0.0
    %170 = vmatpush.msra.mxu0 0.0
    %171 = vmatpush.msra.mxu0 0.0
    %172 = vmatpush.msra.mxu0 0.0
    %173 = vmatpush.msra.mxu0 0.0
    %174 = vmatpush.msra.mxu0 0.0
    %175 = vmatpush.msra.mxu0 0.0
    %176 = vmatpush.msra.mxu0 0.0
    %177 = vmatpush.msra.mxu0 0.0
    %178 = vmatpush.msra.mxu0 %v43
    %179 = vmatpush.msra.mxu0 %v42
    %180 = vmatpush.msra.mxu0 %v41
    %181 = vmatpush.msra.mxu0 %v40
    %182 = vmatmul.f32.gmra.mxu0 %v96
    %v183 = vpop.f32.mrf.mxu0
    %v184 = vadd.f32 %v119, %v183
    %185 = vmatmul.f32.gmra.mxu0 %v99
    %v186 = vpop.f32.mrf.mxu0
    %v187 = vadd.f32 %v122, %v186
    %188 = vmatmul.f32.gmra.mxu0 %v90
    %v189 = vpop.f32.mrf.mxu0
    %v190 = vadd.f32 %v125, %v189
    %191 = vmatmul.f32.gmra.mxu0 %v93
    %v192 = vpop.f32.mrf.mxu0
    %v193 = vadd.f32 %v128, %v192
    %194 = vmatmul.f32.gmra.mxu0 %v84
    %v195 = vpop.f32.mrf.mxu0
    %v196 = vadd.f32 %v131, %v195
    %197 = vmatmul.f32.gmra.mxu0 %v87
    %v198 = vpop.f32.mrf.mxu0
    %v199 = vadd.f32 %v134, %v198
    %200 = vmatmul.f32.gmra.mxu0 %v78
    %v201 = vpop.f32.mrf.mxu0
    %v202 = vadd.f32 %v137, %v201
    %203 = vmatmul.f32.gmra.mxu0 %v81
    %v204 = vpop.f32.mrf.mxu0
    %v205 = vadd.f32 %v140, %v204
    %206 = vmatmul.f32.gmra.mxu0 %v72
    %v207 = vpop.f32.mrf.mxu0
    %v208 = vadd.f32 %v143, %v207
    %209 = vmatmul.f32.gmra.mxu0 %v75
    %v210 = vpop.f32.mrf.mxu0
    %v211 = vadd.f32 %v146, %v210
    %212 = vmatmul.f32.gmra.mxu0 %v66
    %v213 = vpop.f32.mrf.mxu0
    %v214 = vadd.f32 %v149, %v213
    %215 = vmatmul.f32.gmra.mxu0 %v69
    %v216 = vpop.f32.mrf.mxu0
    %v217 = vadd.f32 %v152, %v216
    %218 = vmatmul.f32.gmra.mxu0 %v60
    %v219 = vpop.f32.mrf.mxu0
    %v220 = vadd.f32 %v155, %v219
    %221 = vmatmul.f32.gmra.mxu0 %v63
    %v222 = vpop.f32.mrf.mxu0
    %v223 = vadd.f32 %v158, %v222
    %224 = vmatmul.f32.gmra.mxu0 %v54
    %v225 = vpop.f32.mrf.mxu0
    %v226 = vadd.f32 %v161, %v225
    %227 = vmatmul.f32.gmra.mxu0 %v57
    %v228 = vpop.f32.mrf.mxu0
    %v229 = vadd.f32 %v164, %v228
    %230 = vdwg.mxu0
    %v231 = vperm.slane %v22, 0
    %v232 = vadd.f32 %v184, %v231
    %v233 = vadd.f32 %v187, %v231
    %v234 = vadd.f32 %v190, %v231
    %v235 = vadd.f32 %v193, %v231
    %v236 = vadd.f32 %v196, %v231
    %v237 = vadd.f32 %v199, %v231
    %v238 = vadd.f32 %v202, %v231
    %v239 = vadd.f32 %v205, %v231
    %v240 = vadd.f32 %v208, %v231
    %v241 = vadd.f32 %v211, %v231
    %v242 = vadd.f32 %v214, %v231
    %v243 = vadd.f32 %v217, %v231
    %v244 = vadd.f32 %v220, %v231
    %v245 = vadd.f32 %v223, %v231
    %v246 = vadd.f32 %v226, %v231
    %v247 = vadd.f32 %v229, %v231
    %v252 = vunpack.c.l.b16 %v48
    %v253 = vunpack.c.l.b16 %v49
    %v254 = vunpack.c.l.b16 %v50
    %v255 = vunpack.c.l.b16 %v51
    %v256 = vpack.c.b16 %v253, %v252
    %v257 = vpack.c.b16 %v255, %v254
    %v261 = vsel %vm52, 0, 0
    %263 = vmatpush.bf16.msra.mxu0 0
    %264 = vmatpush.bf16.msra.mxu0 0
    %265 = vmatpush.bf16.msra.mxu0 0
    %266 = vmatpush.bf16.msra.mxu0 0
    %267 = vmatpush.bf16.msra.mxu0 0
    %268 = vmatpush.bf16.msra.mxu0 0
    %269 = vmatpush.bf16.msra.mxu0 %v257
    %270 = vmatpush.bf16.msra.mxu0 %v256
    %271 = vmatmul.bf16.gmra.mxu0 %v261
    %v272 = vpop.f32.mrf.mxu0
    %v273 = vadd.f32 0.0, %v272
    %v274 = vpop.f32.mrf.mxu0
    %v275 = vadd.f32 0.0, %v274
    %276 = vdwg.mxu0
    %v277 = vadd.f32 %v232, %v273
    %v278 = vadd.f32 %v233, %v275
    %v279 = vxor.u32 %v277, 2147483648
    %v280 = vxor.u32 %v278, 2147483648
    %v281 = vmul.f32 %v279, 1.442695
    %v282 = vpow.pop %v281
    %v283 = vmul.f32 %v280, 1.442695
    %v284 = vpow.pop %v283
    %v285 = vadd.f32 %v282, 1.0
    %v286 = vadd.f32 %v284, 1.0
    %v287 = vrcp.pop %v285
    %v288 = vmul.f32 %v285, %v287
    %v289 = vsub.f32 1.0, %v288
    %v290 = vmul.f32 %v287, %v289
    %v291 = vadd.f32 %v287, %v290
    %vm292 = vweird.f32 %v285
    %vm293 = vweird.f32 %v287
    %vm294 = vmor %vm292, %vm293
    %v295 = vsel %vm294, %v287, %v291
    %v296 = vand.u32 2147483647, %v285
    %vm297 = vcmp.eq.f32.partialorder %v296, 8.507059e+37
    %v298 = vand.u32 %v285, 2147483648
    %v299 = vor.u32 1.1754944e-38, %v298
    %v300 = vsel %vm297, %v299, %v295
    %v301 = vmul.f32 1.0, %v300
    %v302 = vrcp.pop %v286
    %v303 = vmul.f32 %v286, %v302
    %v304 = vsub.f32 1.0, %v303
    %v305 = vmul.f32 %v302, %v304
    %v306 = vadd.f32 %v302, %v305
    %vm307 = vweird.f32 %v286
    %vm308 = vweird.f32 %v302
    %vm309 = vmor %vm307, %vm308
    %v310 = vsel %vm309, %v302, %v306
    %v311 = vand.u32 2147483647, %v286
    %vm312 = vcmp.eq.f32.partialorder %v311, 8.507059e+37
    %v313 = vand.u32 %v286, 2147483648
    %v314 = vor.u32 1.1754944e-38, %v313
    %v315 = vsel %vm312, %v314, %v310
    %v316 = vmul.f32 1.0, %v315
    %v317 = vtanh.pop %v277
    %v318 = vtanh.pop %v278
    %v319 = vmul.f32 %v301, 0.0
    %v320 = vmul.f32 %v316, 0.0
    %323 = vrot.lane.b32.xlu0 %v317, 64
    %v324 = vpop.permute.xlu0 %323
    %325 = vrot.lane.b32.xlu0 %v318, 64
    %v326 = vpop.permute.xlu0 %325
    %v329 = vmul.f32 %v301, %v324
    %v330 = vmul.f32 %v316, %v326
    %333 = vrot.lane.b32.xlu0 %v329, 32
    %v334 = vpop.permute.xlu0 %333
    %335 = vrot.lane.b32.xlu0 %v330, 32
    %v336 = vpop.permute.xlu0 %335
    %v339 = vadd.f32 %v319, %v334
    %v340 = vadd.f32 %v320, %v336
    %v341 = vtanh.pop %v339
    %v342 = vtanh.pop %v340
    %345 = vrot.lane.b32.xlu0 %v341, 64
    %v346 = vpop.permute.xlu0 %345
    %347 = vrot.lane.b32.xlu0 %v342, 64
    %v348 = vpop.permute.xlu0 %347
    %v351 = vmul.f32 %v301, %v346
    %v352 = vmul.f32 %v316, %v348
    %v353 = vpack.c.bf16 %v352, %v351
    %355 = vrot.lane.b32.xlu0 %v353, 32
    %v356 = vpop.permute.xlu0 %355
    %v358 = vsel %vm52, %v356, 0
    %360 = vmatpush.bf16.msra.mxu0 0
    %361 = vmatpush.bf16.msra.mxu0 0
    %362 = vmatpush.bf16.msra.mxu0 0
    %363 = vmatpush.bf16.msra.mxu0 0
    %364 = vmatpush.bf16.msra.mxu0 0
    %365 = vmatpush.bf16.msra.mxu0 0
    %366 = vmatpush.bf16.msra.mxu0 %v257
    %367 = vmatpush.bf16.msra.mxu0 %v256
    %368 = vmatmul.bf16.gmra.mxu0 %v358
    %v369 = vpop.f32.mrf.mxu0
    %v370 = vadd.f32 0.0, %v369
    %v371 = vpop.f32.mrf.mxu0
    %v372 = vadd.f32 0.0, %v371
    %373 = vdwg.mxu0
    %v374 = vadd.f32 %v234, %v370
    %v375 = vadd.f32 %v235, %v372
    %v376 = vxor.u32 %v374, 2147483648
    %v377 = vxor.u32 %v375, 2147483648
    %v378 = vmul.f32 %v376, 1.442695
    %v379 = vpow.pop %v378
    %v380 = vmul.f32 %v377, 1.442695
    %v381 = vpow.pop %v380
    %v382 = vadd.f32 %v379, 1.0
    %v383 = vadd.f32 %v381, 1.0
    %v384 = vrcp.pop %v382
    %v385 = vmul.f32 %v382, %v384
    %v386 = vsub.f32 1.0, %v385
    %v387 = vmul.f32 %v384, %v386
    %v388 = vadd.f32 %v384, %v387
    %vm389 = vweird.f32 %v382
    %vm390 = vweird.f32 %v384
    %vm391 = vmor %vm389, %vm390
    %v392 = vsel %vm391, %v384, %v388
    %v393 = vand.u32 2147483647, %v382
    %vm394 = vcmp.eq.f32.partialorder %v393, 8.507059e+37
    %v395 = vand.u32 %v382, 2147483648
    %v396 = vor.u32 1.1754944e-38, %v395
    %v397 = vsel %vm394, %v396, %v392
    %v398 = vmul.f32 1.0, %v397
    %v399 = vrcp.pop %v383
    %v400 = vmul.f32 %v383, %v399
    %v401 = vsub.f32 1.0, %v400
    %v402 = vmul.f32 %v399, %v401
    %v403 = vadd.f32 %v399, %v402
    %vm404 = vweird.f32 %v383
    %vm405 = vweird.f32 %v399
    %vm406 = vmor %vm404, %vm405
    %v407 = vsel %vm406, %v399, %v403
    %v408 = vand.u32 2147483647, %v383
    %vm409 = vcmp.eq.f32.partialorder %v408, 8.507059e+37
    %v410 = vand.u32 %v383, 2147483648
    %v411 = vor.u32 1.1754944e-38, %v410
    %v412 = vsel %vm409, %v411, %v407
    %v413 = vmul.f32 1.0, %v412
    %v414 = vtanh.pop %v374
    %v415 = vtanh.pop %v375
    %v416 = vmul.f32 %v398, %v339
    %v417 = vmul.f32 %v413, %v340
    %420 = vrot.lane.b32.xlu0 %v414, 64
    %v421 = vpop.permute.xlu0 %420
    %422 = vrot.lane.b32.xlu0 %v415, 64
    %v423 = vpop.permute.xlu0 %422
    %v426 = vmul.f32 %v398, %v421
    %v427 = vmul.f32 %v413, %v423
    %430 = vrot.lane.b32.xlu0 %v426, 32
    %v431 = vpop.permute.xlu0 %430
    %432 = vrot.lane.b32.xlu0 %v427, 32
    %v433 = vpop.permute.xlu0 %432
    %v436 = vadd.f32 %v416, %v431
    %v437 = vadd.f32 %v417, %v433
    %v438 = vtanh.pop %v436
    %v439 = vtanh.pop %v437
    %442 = vrot.lane.b32.xlu0 %v438, 64
    %v443 = vpop.permute.xlu0 %442
    %444 = vrot.lane.b32.xlu0 %v439, 64
    %v445 = vpop.permute.xlu0 %444
    %v448 = vmul.f32 %v398, %v443
    %v449 = vmul.f32 %v413, %v445
    %v450 = vpack.c.bf16 %v449, %v448
    %452 = vrot.lane.b32.xlu0 %v450, 32
    %v453 = vpop.permute.xlu0 %452
    %v455 = vsel %vm52, %v453, 0
    %457 = vmatpush.bf16.msra.mxu0 0
    %458 = vmatpush.bf16.msra.mxu0 0
    %459 = vmatpush.bf16.msra.mxu0 0
    %460 = vmatpush.bf16.msra.mxu0 0
    %461 = vmatpush.bf16.msra.mxu0 0
    %462 = vmatpush.bf16.msra.mxu0 0
    %463 = vmatpush.bf16.msra.mxu0 %v257
    %464 = vmatpush.bf16.msra.mxu0 %v256
    %465 = vmatmul.bf16.gmra.mxu0 %v455
    %v466 = vpop.f32.mrf.mxu0
    %v467 = vadd.f32 0.0, %v466
    %v468 = vpop.f32.mrf.mxu0
    %v469 = vadd.f32 0.0, %v468
    %470 = vdwg.mxu0
    %v471 = vadd.f32 %v236, %v467
    %v472 = vadd.f32 %v237, %v469
    %v473 = vxor.u32 %v471, 2147483648
    %v474 = vxor.u32 %v472, 2147483648
    %v475 = vmul.f32 %v473, 1.442695
    %v476 = vpow.pop %v475
    %v477 = vmul.f32 %v474, 1.442695
    %v478 = vpow.pop %v477
    %v479 = vadd.f32 %v476, 1.0
    %v480 = vadd.f32 %v478, 1.0
    %v481 = vrcp.pop %v479
    %v482 = vmul.f32 %v479, %v481
    %v483 = vsub.f32 1.0, %v482
    %v484 = vmul.f32 %v481, %v483
    %v485 = vadd.f32 %v481, %v484
    %vm486 = vweird.f32 %v479
    %vm487 = vweird.f32 %v481
    %vm488 = vmor %vm486, %vm487
    %v489 = vsel %vm488, %v481, %v485
    %v490 = vand.u32 2147483647, %v479
    %vm491 = vcmp.eq.f32.partialorder %v490, 8.507059e+37
    %v492 = vand.u32 %v479, 2147483648
    %v493 = vor.u32 1.1754944e-38, %v492
    %v494 = vsel %vm491, %v493, %v489
    %v495 = vmul.f32 1.0, %v494
    %v496 = vrcp.pop %v480
    %v497 = vmul.f32 %v480, %v496
    %v498 = vsub.f32 1.0, %v497
    %v499 = vmul.f32 %v496, %v498
    %v500 = vadd.f32 %v496, %v499
    %vm501 = vweird.f32 %v480
    %vm502 = vweird.f32 %v496
    %vm503 = vmor %vm501, %vm502
    %v504 = vsel %vm503, %v496, %v500
    %v505 = vand.u32 2147483647, %v480
    %vm506 = vcmp.eq.f32.partialorder %v505, 8.507059e+37
    %v507 = vand.u32 %v480, 2147483648
    %v508 = vor.u32 1.1754944e-38, %v507
    %v509 = vsel %vm506, %v508, %v504
    %v510 = vmul.f32 1.0, %v509
    %v511 = vtanh.pop %v471
    %v512 = vtanh.pop %v472
    %v513 = vmul.f32 %v495, %v436
    %v514 = vmul.f32 %v510, %v437
    %517 = vrot.lane.b32.xlu0 %v511, 64
    %v518 = vpop.permute.xlu0 %517
    %519 = vrot.lane.b32.xlu0 %v512, 64
    %v520 = vpop.permute.xlu0 %519
    %v523 = vmul.f32 %v495, %v518
    %v524 = vmul.f32 %v510, %v520
    %527 = vrot.lane.b32.xlu0 %v523, 32
    %v528 = vpop.permute.xlu0 %527
    %529 = vrot.lane.b32.xlu0 %v524, 32
    %v530 = vpop.permute.xlu0 %529
    %v533 = vadd.f32 %v513, %v528
    %v534 = vadd.f32 %v514, %v530
    %v535 = vtanh.pop %v533
    %v536 = vtanh.pop %v534
    %539 = vrot.lane.b32.xlu0 %v535, 64
    %v540 = vpop.permute.xlu0 %539
    %541 = vrot.lane.b32.xlu0 %v536, 64
    %v542 = vpop.permute.xlu0 %541
    %v545 = vmul.f32 %v495, %v540
    %v546 = vmul.f32 %v510, %v542
    %v547 = vpack.c.bf16 %v546, %v545
    %549 = vrot.lane.b32.xlu0 %v547, 32
    %v550 = vpop.permute.xlu0 %549
    %v552 = vsel %vm52, %v550, 0
    %554 = vmatpush.bf16.msra.mxu0 0
    %555 = vmatpush.bf16.msra.mxu0 0
    %556 = vmatpush.bf16.msra.mxu0 0
    %557 = vmatpush.bf16.msra.mxu0 0
    %558 = vmatpush.bf16.msra.mxu0 0
    %559 = vmatpush.bf16.msra.mxu0 0
    %560 = vmatpush.bf16.msra.mxu0 %v257
    %561 = vmatpush.bf16.msra.mxu0 %v256
    %562 = vmatmul.bf16.gmra.mxu0 %v552
    %v563 = vpop.f32.mrf.mxu0
    %v564 = vadd.f32 0.0, %v563
    %v565 = vpop.f32.mrf.mxu0
    %v566 = vadd.f32 0.0, %v565
    %567 = vdwg.mxu0
    %v568 = vadd.f32 %v238, %v564
    %v569 = vadd.f32 %v239, %v566
    %v570 = vxor.u32 %v568, 2147483648
    %v571 = vxor.u32 %v569, 2147483648
    %v572 = vmul.f32 %v570, 1.442695
    %v573 = vpow.pop %v572
    %v574 = vmul.f32 %v571, 1.442695
    %v575 = vpow.pop %v574
    %v576 = vadd.f32 %v573, 1.0
    %v577 = vadd.f32 %v575, 1.0
    %v578 = vrcp.pop %v576
    %v579 = vmul.f32 %v576, %v578
    %v580 = vsub.f32 1.0, %v579
    %v581 = vmul.f32 %v578, %v580
    %v582 = vadd.f32 %v578, %v581
    %vm583 = vweird.f32 %v576
    %vm584 = vweird.f32 %v578
    %vm585 = vmor %vm583, %vm584
    %v586 = vsel %vm585, %v578, %v582
    %v587 = vand.u32 2147483647, %v576
    %vm588 = vcmp.eq.f32.partialorder %v587, 8.507059e+37
    %v589 = vand.u32 %v576, 2147483648
    %v590 = vor.u32 1.1754944e-38, %v589
    %v591 = vsel %vm588, %v590, %v586
    %v592 = vmul.f32 1.0, %v591
    %v593 = vrcp.pop %v577
    %v594 = vmul.f32 %v577, %v593
    %v595 = vsub.f32 1.0, %v594
    %v596 = vmul.f32 %v593, %v595
    %v597 = vadd.f32 %v593, %v596
    %vm598 = vweird.f32 %v577
    %vm599 = vweird.f32 %v593
    %vm600 = vmor %vm598, %vm599
    %v601 = vsel %vm600, %v593, %v597
    %v602 = vand.u32 2147483647, %v577
    %vm603 = vcmp.eq.f32.partialorder %v602, 8.507059e+37
    %v604 = vand.u32 %v577, 2147483648
    %v605 = vor.u32 1.1754944e-38, %v604
    %v606 = vsel %vm603, %v605, %v601
    %v607 = vmul.f32 1.0, %v606
    %v608 = vtanh.pop %v568
    %v609 = vtanh.pop %v569
    %v610 = vmul.f32 %v592, %v533
    %v611 = vmul.f32 %v607, %v534
    %614 = vrot.lane.b32.xlu0 %v608, 64
    %v615 = vpop.permute.xlu0 %614
    %616 = vrot.lane.b32.xlu0 %v609, 64
    %v617 = vpop.permute.xlu0 %616
    %v620 = vmul.f32 %v592, %v615
    %v621 = vmul.f32 %v607, %v617
    %624 = vrot.lane.b32.xlu0 %v620, 32
    %v625 = vpop.permute.xlu0 %624
    %626 = vrot.lane.b32.xlu0 %v621, 32
    %v627 = vpop.permute.xlu0 %626
    %v630 = vadd.f32 %v610, %v625
    %v631 = vadd.f32 %v611, %v627
    %v632 = vtanh.pop %v630
    %v633 = vtanh.pop %v631
    %636 = vrot.lane.b32.xlu0 %v632, 64
    %v637 = vpop.permute.xlu0 %636
    %638 = vrot.lane.b32.xlu0 %v633, 64
    %v639 = vpop.permute.xlu0 %638
    %v642 = vmul.f32 %v592, %v637
    %v643 = vmul.f32 %v607, %v639
    %v644 = vpack.c.bf16 %v643, %v642
    %646 = vrot.lane.b32.xlu0 %v644, 32
    %v647 = vpop.permute.xlu0 %646
    %v649 = vsel %vm52, %v647, 0
    %651 = vmatpush.bf16.msra.mxu0 0
    %652 = vmatpush.bf16.msra.mxu0 0
    %653 = vmatpush.bf16.msra.mxu0 0
    %654 = vmatpush.bf16.msra.mxu0 0
    %655 = vmatpush.bf16.msra.mxu0 0
    %656 = vmatpush.bf16.msra.mxu0 0
    %657 = vmatpush.bf16.msra.mxu0 %v257
    %658 = vmatpush.bf16.msra.mxu0 %v256
    %659 = vmatmul.bf16.gmra.mxu0 %v649
    %v660 = vpop.f32.mrf.mxu0
    %v661 = vadd.f32 0.0, %v660
    %v662 = vpop.f32.mrf.mxu0
    %v663 = vadd.f32 0.0, %v662
    %664 = vdwg.mxu0
    %v665 = vadd.f32 %v240, %v661
    %v666 = vadd.f32 %v241, %v663
    %v667 = vxor.u32 %v665, 2147483648
    %v668 = vxor.u32 %v666, 2147483648
    %v669 = vmul.f32 %v667, 1.442695
    %v670 = vpow.pop %v669
    %v671 = vmul.f32 %v668, 1.442695
    %v672 = vpow.pop %v671
    %v673 = vadd.f32 %v670, 1.0
    %v674 = vadd.f32 %v672, 1.0
    %v675 = vrcp.pop %v673
    %v676 = vmul.f32 %v673, %v675
    %v677 = vsub.f32 1.0, %v676
    %v678 = vmul.f32 %v675, %v677
    %v679 = vadd.f32 %v675, %v678
    %vm680 = vweird.f32 %v673
    %vm681 = vweird.f32 %v675
    %vm682 = vmor %vm680, %vm681
    %v683 = vsel %vm682, %v675, %v679
    %v684 = vand.u32 2147483647, %v673
    %vm685 = vcmp.eq.f32.partialorder %v684, 8.507059e+37
    %v686 = vand.u32 %v673, 2147483648
    %v687 = vor.u32 1.1754944e-38, %v686
    %v688 = vsel %vm685, %v687, %v683
    %v689 = vmul.f32 1.0, %v688
    %v690 = vrcp.pop %v674
    %v691 = vmul.f32 %v674, %v690
    %v692 = vsub.f32 1.0, %v691
    %v693 = vmul.f32 %v690, %v692
    %v694 = vadd.f32 %v690, %v693
    %vm695 = vweird.f32 %v674
    %vm696 = vweird.f32 %v690
    %vm697 = vmor %vm695, %vm696
    %v698 = vsel %vm697, %v690, %v694
    %v699 = vand.u32 2147483647, %v674
    %vm700 = vcmp.eq.f32.partialorder %v699, 8.507059e+37
    %v701 = vand.u32 %v674, 2147483648
    %v702 = vor.u32 1.1754944e-38, %v701
    %v703 = vsel %vm700, %v702, %v698
    %v704 = vmul.f32 1.0, %v703
    %v705 = vtanh.pop %v665
    %v706 = vtanh.pop %v666
    %v707 = vmul.f32 %v689, %v630
    %v708 = vmul.f32 %v704, %v631
    %711 = vrot.lane.b32.xlu0 %v705, 64
    %v712 = vpop.permute.xlu0 %711
    %713 = vrot.lane.b32.xlu0 %v706, 64
    %v714 = vpop.permute.xlu0 %713
    %v717 = vmul.f32 %v689, %v712
    %v718 = vmul.f32 %v704, %v714
    %721 = vrot.lane.b32.xlu0 %v717, 32
    %v722 = vpop.permute.xlu0 %721
    %723 = vrot.lane.b32.xlu0 %v718, 32
    %v724 = vpop.permute.xlu0 %723
    %v727 = vadd.f32 %v707, %v722
    %v728 = vadd.f32 %v708, %v724
    %v729 = vtanh.pop %v727
    %v730 = vtanh.pop %v728
    %733 = vrot.lane.b32.xlu0 %v729, 64
    %v734 = vpop.permute.xlu0 %733
    %735 = vrot.lane.b32.xlu0 %v730, 64
    %v736 = vpop.permute.xlu0 %735
    %v739 = vmul.f32 %v689, %v734
    %v740 = vmul.f32 %v704, %v736
    %v741 = vpack.c.bf16 %v740, %v739
    %743 = vrot.lane.b32.xlu0 %v741, 32
    %v744 = vpop.permute.xlu0 %743
    %v746 = vsel %vm52, %v744, 0
    %748 = vmatpush.bf16.msra.mxu0 0
    %749 = vmatpush.bf16.msra.mxu0 0
    %750 = vmatpush.bf16.msra.mxu0 0
    %751 = vmatpush.bf16.msra.mxu0 0
    %752 = vmatpush.bf16.msra.mxu0 0
    %753 = vmatpush.bf16.msra.mxu0 0
    %754 = vmatpush.bf16.msra.mxu0 %v257
    %755 = vmatpush.bf16.msra.mxu0 %v256
    %756 = vmatmul.bf16.gmra.mxu0 %v746
    %v757 = vpop.f32.mrf.mxu0
    %v758 = vadd.f32 0.0, %v757
    %v759 = vpop.f32.mrf.mxu0
    %v760 = vadd.f32 0.0, %v759
    %761 = vdwg.mxu0
    %v762 = vadd.f32 %v242, %v758
    %v763 = vadd.f32 %v243, %v760
    %v764 = vxor.u32 %v762, 2147483648
    %v765 = vxor.u32 %v763, 2147483648
    %v766 = vmul.f32 %v764, 1.442695
    %v767 = vpow.pop %v766
    %v768 = vmul.f32 %v765, 1.442695
    %v769 = vpow.pop %v768
    %v770 = vadd.f32 %v767, 1.0
    %v771 = vadd.f32 %v769, 1.0
    %v772 = vrcp.pop %v770
    %v773 = vmul.f32 %v770, %v772
    %v774 = vsub.f32 1.0, %v773
    %v775 = vmul.f32 %v772, %v774
    %v776 = vadd.f32 %v772, %v775
    %vm777 = vweird.f32 %v770
    %vm778 = vweird.f32 %v772
    %vm779 = vmor %vm777, %vm778
    %v780 = vsel %vm779, %v772, %v776
    %v781 = vand.u32 2147483647, %v770
    %vm782 = vcmp.eq.f32.partialorder %v781, 8.507059e+37
    %v783 = vand.u32 %v770, 2147483648
    %v784 = vor.u32 1.1754944e-38, %v783
    %v785 = vsel %vm782, %v784, %v780
    %v786 = vmul.f32 1.0, %v785
    %v787 = vrcp.pop %v771
    %v788 = vmul.f32 %v771, %v787
    %v789 = vsub.f32 1.0, %v788
    %v790 = vmul.f32 %v787, %v789
    %v791 = vadd.f32 %v787, %v790
    %vm792 = vweird.f32 %v771
    %vm793 = vweird.f32 %v787
    %vm794 = vmor %vm792, %vm793
    %v795 = vsel %vm794, %v787, %v791
    %v796 = vand.u32 2147483647, %v771
    %vm797 = vcmp.eq.f32.partialorder %v796, 8.507059e+37
    %v798 = vand.u32 %v771, 2147483648
    %v799 = vor.u32 1.1754944e-38, %v798
    %v800 = vsel %vm797, %v799, %v795
    %v801 = vmul.f32 1.0, %v800
    %v802 = vtanh.pop %v762
    %v803 = vtanh.pop %v763
    %v804 = vmul.f32 %v786, %v727
    %v805 = vmul.f32 %v801, %v728
    %808 = vrot.lane.b32.xlu0 %v802, 64
    %v809 = vpop.permute.xlu0 %808
    %810 = vrot.lane.b32.xlu0 %v803, 64
    %v811 = vpop.permute.xlu0 %810
    %v814 = vmul.f32 %v786, %v809
    %v815 = vmul.f32 %v801, %v811
    %818 = vrot.lane.b32.xlu0 %v814, 32
    %v819 = vpop.permute.xlu0 %818
    %820 = vrot.lane.b32.xlu0 %v815, 32
    %v821 = vpop.permute.xlu0 %820
    %v824 = vadd.f32 %v804, %v819
    %v825 = vadd.f32 %v805, %v821
    %v826 = vtanh.pop %v824
    %v827 = vtanh.pop %v825
    %830 = vrot.lane.b32.xlu0 %v826, 64
    %v831 = vpop.permute.xlu0 %830
    %832 = vrot.lane.b32.xlu0 %v827, 64
    %v833 = vpop.permute.xlu0 %832
    %v836 = vmul.f32 %v786, %v831
    %v837 = vmul.f32 %v801, %v833
    %v838 = vpack.c.bf16 %v837, %v836
    %840 = vrot.lane.b32.xlu0 %v838, 32
    %v841 = vpop.permute.xlu0 %840
    %v843 = vsel %vm52, %v841, 0
    %845 = vmatpush.bf16.msra.mxu0 0
    %846 = vmatpush.bf16.msra.mxu0 0
    %847 = vmatpush.bf16.msra.mxu0 0
    %848 = vmatpush.bf16.msra.mxu0 0
    %849 = vmatpush.bf16.msra.mxu0 0
    %850 = vmatpush.bf16.msra.mxu0 0
    %851 = vmatpush.bf16.msra.mxu0 %v257
    %852 = vmatpush.bf16.msra.mxu0 %v256
    %853 = vmatmul.bf16.gmra.mxu0 %v843
    %v854 = vpop.f32.mrf.mxu0
    %v855 = vadd.f32 0.0, %v854
    %v856 = vpop.f32.mrf.mxu0
    %v857 = vadd.f32 0.0, %v856
    %858 = vdwg.mxu0
    %v859 = vadd.f32 %v244, %v855
    %v860 = vadd.f32 %v245, %v857
    %v861 = vxor.u32 %v859, 2147483648
    %v862 = vxor.u32 %v860, 2147483648
    %v863 = vmul.f32 %v861, 1.442695
    %v864 = vpow.pop %v863
    %v865 = vmul.f32 %v862, 1.442695
    %v866 = vpow.pop %v865
    %v867 = vadd.f32 %v864, 1.0
    %v868 = vadd.f32 %v866, 1.0
    %v869 = vrcp.pop %v867
    %v870 = vmul.f32 %v867, %v869
    %v871 = vsub.f32 1.0, %v870
    %v872 = vmul.f32 %v869, %v871
    %v873 = vadd.f32 %v869, %v872
    %vm874 = vweird.f32 %v867
    %vm875 = vweird.f32 %v869
    %vm876 = vmor %vm874, %vm875
    %v877 = vsel %vm876, %v869, %v873
    %v878 = vand.u32 2147483647, %v867
    %vm879 = vcmp.eq.f32.partialorder %v878, 8.507059e+37
    %v880 = vand.u32 %v867, 2147483648
    %v881 = vor.u32 1.1754944e-38, %v880
    %v882 = vsel %vm879, %v881, %v877
    %v883 = vmul.f32 1.0, %v882
    %v884 = vrcp.pop %v868
    %v885 = vmul.f32 %v868, %v884
    %v886 = vsub.f32 1.0, %v885
    %v887 = vmul.f32 %v884, %v886
    %v888 = vadd.f32 %v884, %v887
    %vm889 = vweird.f32 %v868
    %vm890 = vweird.f32 %v884
    %vm891 = vmor %vm889, %vm890
    %v892 = vsel %vm891, %v884, %v888
    %v893 = vand.u32 2147483647, %v868
    %vm894 = vcmp.eq.f32.partialorder %v893, 8.507059e+37
    %v895 = vand.u32 %v868, 2147483648
    %v896 = vor.u32 1.1754944e-38, %v895
    %v897 = vsel %vm894, %v896, %v892
    %v898 = vmul.f32 1.0, %v897
    %v899 = vtanh.pop %v859
    %v900 = vtanh.pop %v860
    %v901 = vmul.f32 %v883, %v824
    %v902 = vmul.f32 %v898, %v825
    %905 = vrot.lane.b32.xlu0 %v899, 64
    %v906 = vpop.permute.xlu0 %905
    %907 = vrot.lane.b32.xlu0 %v900, 64
    %v908 = vpop.permute.xlu0 %907
    %v911 = vmul.f32 %v883, %v906
    %v912 = vmul.f32 %v898, %v908
    %915 = vrot.lane.b32.xlu0 %v911, 32
    %v916 = vpop.permute.xlu0 %915
    %917 = vrot.lane.b32.xlu0 %v912, 32
    %v918 = vpop.permute.xlu0 %917
    %v921 = vadd.f32 %v901, %v916
    %v922 = vadd.f32 %v902, %v918
    %v923 = vtanh.pop %v921
    %v924 = vtanh.pop %v922
    %927 = vrot.lane.b32.xlu0 %v923, 64
    %v928 = vpop.permute.xlu0 %927
    %929 = vrot.lane.b32.xlu0 %v924, 64
    %v930 = vpop.permute.xlu0 %929
    %v933 = vmul.f32 %v883, %v928
    %v934 = vmul.f32 %v898, %v930
    %v935 = vpack.c.bf16 %v934, %v933
    %937 = vrot.lane.b32.xlu0 %v935, 32
    %v938 = vpop.permute.xlu0 %937
    %v940 = vsel %vm52, %v938, 0
    %942 = vmatpush.bf16.msra.mxu0 0
    %943 = vmatpush.bf16.msra.mxu0 0
    %944 = vmatpush.bf16.msra.mxu0 0
    %945 = vmatpush.bf16.msra.mxu0 0
    %946 = vmatpush.bf16.msra.mxu0 0
    %947 = vmatpush.bf16.msra.mxu0 0
    %948 = vmatpush.bf16.msra.mxu0 %v257
    %949 = vmatpush.bf16.msra.mxu0 %v256
    %950 = vmatmul.bf16.gmra.mxu0 %v940
    %v951 = vpop.f32.mrf.mxu0
    %v952 = vadd.f32 0.0, %v951
    %v953 = vpop.f32.mrf.mxu0
    %v954 = vadd.f32 0.0, %v953
    %955 = vdwg.mxu0
    %v956 = vadd.f32 %v246, %v952
    %v957 = vadd.f32 %v247, %v954
    %v958 = vxor.u32 %v956, 2147483648
    %v959 = vxor.u32 %v957, 2147483648
    %v960 = vmul.f32 %v958, 1.442695
    %v961 = vpow.pop %v960
    %v962 = vmul.f32 %v959, 1.442695
    %v963 = vpow.pop %v962
    %v964 = vadd.f32 %v961, 1.0
    %v965 = vadd.f32 %v963, 1.0
    %v966 = vrcp.pop %v964
    %v967 = vmul.f32 %v964, %v966
    %v968 = vsub.f32 1.0, %v967
    %v969 = vmul.f32 %v966, %v968
    %v970 = vadd.f32 %v966, %v969
    %vm971 = vweird.f32 %v964
    %vm972 = vweird.f32 %v966
    %vm973 = vmor %vm971, %vm972
    %v974 = vsel %vm973, %v966, %v970
    %v975 = vand.u32 2147483647, %v964
    %vm976 = vcmp.eq.f32.partialorder %v975, 8.507059e+37
    %v977 = vand.u32 %v964, 2147483648
    %v978 = vor.u32 1.1754944e-38, %v977
    %v979 = vsel %vm976, %v978, %v974
    %v980 = vmul.f32 1.0, %v979
    %v981 = vrcp.pop %v965
    %v982 = vmul.f32 %v965, %v981
    %v983 = vsub.f32 1.0, %v982
    %v984 = vmul.f32 %v981, %v983
    %v985 = vadd.f32 %v981, %v984
    %vm986 = vweird.f32 %v965
    %vm987 = vweird.f32 %v981
    %vm988 = vmor %vm986, %vm987
    %v989 = vsel %vm988, %v981, %v985
    %v990 = vand.u32 2147483647, %v965
    %vm991 = vcmp.eq.f32.partialorder %v990, 8.507059e+37
    %v992 = vand.u32 %v965, 2147483648
    %v993 = vor.u32 1.1754944e-38, %v992
    %v994 = vsel %vm991, %v993, %v989
    %v995 = vmul.f32 1.0, %v994
    %v996 = vtanh.pop %v956
    %v997 = vtanh.pop %v957
    %v998 = vmul.f32 %v980, %v921
    %v999 = vmul.f32 %v995, %v922
    %1002 = vrot.lane.b32.xlu0 %v996, 64
    %v1003 = vpop.permute.xlu0 %1002
    %1004 = vrot.lane.b32.xlu0 %v997, 64
    %v1005 = vpop.permute.xlu0 %1004
    %v1008 = vmul.f32 %v980, %v1003
    %v1009 = vmul.f32 %v995, %v1005
    %1012 = vrot.lane.b32.xlu0 %v1008, 32
    %v1013 = vpop.permute.xlu0 %1012
    %1014 = vrot.lane.b32.xlu0 %v1009, 32
    %v1015 = vpop.permute.xlu0 %1014
    %v1018 = vadd.f32 %v998, %v1013
    %v1019 = vadd.f32 %v999, %v1015
    %v1020 = vtanh.pop %v1018
    %v1021 = vtanh.pop %v1019
    %1024 = vrot.lane.b32.xlu0 %v1020, 64
    %v1025 = vpop.permute.xlu0 %1024
    %1026 = vrot.lane.b32.xlu0 %v1021, 64
    %v1027 = vpop.permute.xlu0 %1026
    %v1030 = vmul.f32 %v980, %v1025
    %v1031 = vmul.f32 %v995, %v1027
    %1034 = vrot.lane.b32.xlu0 %v351, 32
    %v1035 = vpop.permute.xlu0 %1034
    %1036 = vrot.lane.b32.xlu0 %v352, 32
    %v1037 = vpop.permute.xlu0 %1036
    %1042 = vrot.lane.b32.xlu0 %v1030, 32
    %v1043 = vpop.permute.xlu0 %1042
    %1044 = vrot.lane.b32.xlu0 %v1031, 32
    %v1045 = vpop.permute.xlu0 %1044
    %vm1048 = vcmask 130048
    %v1049 = vsel %vm1048, %v1035, %v1043
    %v1050 = vsel %vm1048, %v1037, %v1045
    %1053 = vrot.lane.b32.xlu0 %v448, 32
    %v1054 = vpop.permute.xlu0 %1053
    %1055 = vrot.lane.b32.xlu0 %v449, 32
    %v1056 = vpop.permute.xlu0 %1055
    %1061 = vrot.lane.b32.xlu0 %v933, 32
    %v1062 = vpop.permute.xlu0 %1061
    %1063 = vrot.lane.b32.xlu0 %v934, 32
    %v1064 = vpop.permute.xlu0 %1063
    %v1067 = vsel %vm1048, %v1054, %v1062
    %v1068 = vsel %vm1048, %v1056, %v1064
    %1071 = vrot.lane.b32.xlu0 %v545, 32
    %v1072 = vpop.permute.xlu0 %1071
    %1073 = vrot.lane.b32.xlu0 %v546, 32
    %v1074 = vpop.permute.xlu0 %1073
    %1079 = vrot.lane.b32.xlu0 %v836, 32
    %v1080 = vpop.permute.xlu0 %1079
    %1081 = vrot.lane.b32.xlu0 %v837, 32
    %v1082 = vpop.permute.xlu0 %1081
    %v1085 = vsel %vm1048, %v1072, %v1080
    %v1086 = vsel %vm1048, %v1074, %v1082
    %1089 = vrot.lane.b32.xlu0 %v642, 32
    %v1090 = vpop.permute.xlu0 %1089
    %1091 = vrot.lane.b32.xlu0 %v643, 32
    %v1092 = vpop.permute.xlu0 %1091
    %1097 = vrot.lane.b32.xlu0 %v739, 32
    %v1098 = vpop.permute.xlu0 %1097
    %1099 = vrot.lane.b32.xlu0 %v740, 32
    %v1100 = vpop.permute.xlu0 %1099
    %v1103 = vsel %vm1048, %v1090, %v1098
    %v1104 = vsel %vm1048, %v1092, %v1100
    %v1105 = vsel %vm1048, %v1098, %v1090
    %v1106 = vsel %vm1048, %v1100, %v1092
    %v1107 = vsel %vm1048, %v1080, %v1072
    %v1108 = vsel %vm1048, %v1082, %v1074
    %v1109 = vsel %vm1048, %v1062, %v1054
    %v1110 = vsel %vm1048, %v1064, %v1056
    %v1111 = vsel %vm1048, %v1043, %v1035
    %v1112 = vsel %vm1048, %v1045, %v1037
    %v1113 = vld [vmem:[%s3] sm:$0xff]
    %v1114 = vld [vmem:[%s3 + $0x8] sm:$0xff]
    %v1115 = vld [vmem:[%s3 + $0x10] sm:$0xff]
    %v1116 = vld [vmem:[%s3 + $0x18] sm:$0xff]
    %v1117 = vperm.slane %v22, 3
    %v1119 = vsel %vm52, %v1049, 0
    %v1122 = vsel %vm52, %v1050, 0
    %v1125 = vsel %vm52, %v1067, 0
    %v1128 = vsel %vm52, %v1068, 0
    %v1131 = vsel %vm52, %v1085, 0
    %v1134 = vsel %vm52, %v1086, 0
    %v1137 = vsel %vm52, %v1103, 0
    %v1140 = vsel %vm52, %v1104, 0
    %v1143 = vsel %vm52, %v1105, 0
    %v1146 = vsel %vm52, %v1106, 0
    %v1149 = vsel %vm52, %v1107, 0
    %v1152 = vsel %vm52, %v1108, 0
    %v1155 = vsel %vm52, %v1109, 0
    %v1158 = vsel %vm52, %v1110, 0
    %v1161 = vsel %vm52, %v1111, 0
    %v1164 = vsel %vm52, %v1112, 0
    %1166 = vmatpush.msra.mxu0 0.0
    %1167 = vmatpush.msra.mxu0 0.0
    %1168 = vmatpush.msra.mxu0 0.0
    %1169 = vmatpush.msra.mxu0 0.0
    %1170 = vmatpush.msra.mxu0 0.0
    %1171 = vmatpush.msra.mxu0 0.0
    %1172 = vmatpush.msra.mxu0 0.0
    %1173 = vmatpush.msra.mxu0 0.0
    %1174 = vmatpush.msra.mxu0 0.0
    %1175 = vmatpush.msra.mxu0 0.0
    %1176 = vmatpush.msra.mxu0 0.0
    %1177 = vmatpush.msra.mxu0 0.0
    %1178 = vmatpush.msra.mxu0 %v1116
    %1179 = vmatpush.msra.mxu0 %v1115
    %1180 = vmatpush.msra.mxu0 %v1114
    %1181 = vmatpush.msra.mxu0 %v1113
    %1182 = vmatmul.f32.gmra.mxu0 %v1119
    %v1183 = vpop.f32.mrf.mxu0
    %v1184 = vadd.f32 %v1117, %v1183
    %1185 = vmatmul.f32.gmra.mxu0 %v1122
    %v1186 = vpop.f32.mrf.mxu0
    %v1187 = vadd.f32 %v1117, %v1186
    %1188 = vmatmul.f32.gmra.mxu0 %v1125
    %v1189 = vpop.f32.mrf.mxu0
    %v1190 = vadd.f32 %v1117, %v1189
    %1191 = vmatmul.f32.gmra.mxu0 %v1128
    %v1192 = vpop.f32.mrf.mxu0
    %v1193 = vadd.f32 %v1117, %v1192
    %1194 = vmatmul.f32.gmra.mxu0 %v1131
    %v1195 = vpop.f32.mrf.mxu0
    %v1196 = vadd.f32 %v1117, %v1195
    %1197 = vmatmul.f32.gmra.mxu0 %v1134
    %v1198 = vpop.f32.mrf.mxu0
    %v1199 = vadd.f32 %v1117, %v1198
    %1200 = vmatmul.f32.gmra.mxu0 %v1137
    %v1201 = vpop.f32.mrf.mxu0
    %v1202 = vadd.f32 %v1117, %v1201
    %1203 = vmatmul.f32.gmra.mxu0 %v1140
    %v1204 = vpop.f32.mrf.mxu0
    %v1205 = vadd.f32 %v1117, %v1204
    %1206 = vmatmul.f32.gmra.mxu0 %v1143
    %v1207 = vpop.f32.mrf.mxu0
    %v1208 = vadd.f32 %v1117, %v1207
    %1209 = vmatmul.f32.gmra.mxu0 %v1146
    %v1210 = vpop.f32.mrf.mxu0
    %v1211 = vadd.f32 %v1117, %v1210
    %1212 = vmatmul.f32.gmra.mxu0 %v1149
    %v1213 = vpop.f32.mrf.mxu0
    %v1214 = vadd.f32 %v1117, %v1213
    %1215 = vmatmul.f32.gmra.mxu0 %v1152
    %v1216 = vpop.f32.mrf.mxu0
    %v1217 = vadd.f32 %v1117, %v1216
    %1218 = vmatmul.f32.gmra.mxu0 %v1155
    %v1219 = vpop.f32.mrf.mxu0
    %v1220 = vadd.f32 %v1117, %v1219
    %1221 = vmatmul.f32.gmra.mxu0 %v1158
    %v1222 = vpop.f32.mrf.mxu0
    %v1223 = vadd.f32 %v1117, %v1222
    %1224 = vmatmul.f32.gmra.mxu0 %v1161
    %v1225 = vpop.f32.mrf.mxu0
    %v1226 = vadd.f32 %v1117, %v1225
    %1227 = vmatmul.f32.gmra.mxu0 %v1164
    %v1228 = vpop.f32.mrf.mxu0
    %v1229 = vadd.f32 %v1117, %v1228
    %1230 = vdwg.mxu0
    %v1231 = vmax.f32 %v1184, 0.0
    %v1232 = vmax.f32 %v1187, 0.0
    %v1233 = vmax.f32 %v1190, 0.0
    %v1234 = vmax.f32 %v1193, 0.0
    %v1235 = vmax.f32 %v1196, 0.0
    %v1236 = vmax.f32 %v1199, 0.0
    %v1237 = vmax.f32 %v1202, 0.0
    %v1238 = vmax.f32 %v1205, 0.0
    %v1239 = vmax.f32 %v1208, 0.0
    %v1240 = vmax.f32 %v1211, 0.0
    %v1241 = vmax.f32 %v1214, 0.0
    %v1242 = vmax.f32 %v1217, 0.0
    %v1243 = vmax.f32 %v1220, 0.0
    %v1244 = vmax.f32 %v1223, 0.0
    %v1245 = vmax.f32 %v1226, 0.0
    %v1246 = vmax.f32 %v1229, 0.0
    %v1247 = vperm.slane %v22, 4
    %v1248 = vmul.f32 %v1231, %v1247
    %v1249 = vmul.f32 %v1232, %v1247
    %v1250 = vmul.f32 %v1233, %v1247
    %v1251 = vmul.f32 %v1234, %v1247
    %v1252 = vmul.f32 %v1235, %v1247
    %v1253 = vmul.f32 %v1236, %v1247
    %v1254 = vmul.f32 %v1237, %v1247
    %v1255 = vmul.f32 %v1238, %v1247
    %v1256 = vmul.f32 %v1239, %v1247
    %v1257 = vmul.f32 %v1240, %v1247
    %v1258 = vmul.f32 %v1241, %v1247
    %v1259 = vmul.f32 %v1242, %v1247
    %v1260 = vmul.f32 %v1243, %v1247
    %v1261 = vmul.f32 %v1244, %v1247
    %v1262 = vmul.f32 %v1245, %v1247
    %v1263 = vmul.f32 %v1246, %v1247
    %v1264 = vsel %vm52, %v1248, 0.0
    %1265 = vadd.xlane.f32.xlu0 %v1264
    %v1266 = vpop.xlane.xlu0 %1265
    %v1267 = vsel %vm52, %v1249, 0.0
    %1268 = vadd.xlane.f32.xlu0 %v1267
    %v1269 = vpop.xlane.xlu0 %1268
    %v1270 = vsel %vm52, %v1250, 0.0
    %1271 = vadd.xlane.f32.xlu0 %v1270
    %v1272 = vpop.xlane.xlu0 %1271
    %v1273 = vsel %vm52, %v1251, 0.0
    %1274 = vadd.xlane.f32.xlu0 %v1273
    %v1275 = vpop.xlane.xlu0 %1274
    %v1276 = vsel %vm52, %v1252, 0.0
    %1277 = vadd.xlane.f32.xlu0 %v1276
    %v1278 = vpop.xlane.xlu0 %1277
    %v1279 = vsel %vm52, %v1253, 0.0
    %1280 = vadd.xlane.f32.xlu0 %v1279
    %v1281 = vpop.xlane.xlu0 %1280
    %v1282 = vsel %vm52, %v1254, 0.0
    %1283 = vadd.xlane.f32.xlu0 %v1282
    %v1284 = vpop.xlane.xlu0 %1283
    %v1285 = vsel %vm52, %v1255, 0.0
    %1286 = vadd.xlane.f32.xlu0 %v1285
    %v1287 = vpop.xlane.xlu0 %1286
    %v1288 = vsel %vm52, %v1256, 0.0
    %1289 = vadd.xlane.f32.xlu0 %v1288
    %v1290 = vpop.xlane.xlu0 %1289
    %v1291 = vsel %vm52, %v1257, 0.0
    %1292 = vadd.xlane.f32.xlu0 %v1291
    %v1293 = vpop.xlane.xlu0 %1292
    %v1294 = vsel %vm52, %v1258, 0.0
    %1295 = vadd.xlane.f32.xlu0 %v1294
    %v1296 = vpop.xlane.xlu0 %1295
    %v1297 = vsel %vm52, %v1259, 0.0
    %1298 = vadd.xlane.f32.xlu0 %v1297
    %v1299 = vpop.xlane.xlu0 %1298
    %v1300 = vsel %vm52, %v1260, 0.0
    %1301 = vadd.xlane.f32.xlu0 %v1300
    %v1302 = vpop.xlane.xlu0 %1301
    %v1303 = vsel %vm52, %v1261, 0.0
    %1304 = vadd.xlane.f32.xlu0 %v1303
    %v1305 = vpop.xlane.xlu0 %1304
    %v1306 = vsel %vm52, %v1262, 0.0
    %1307 = vadd.xlane.f32.xlu0 %v1306
    %v1308 = vpop.xlane.xlu0 %1307
    %v1309 = vsel %vm52, %v1263, 0.0
    %1310 = vadd.xlane.f32.xlu0 %v1309
    %v1311 = vpop.xlane.xlu0 %1310
    %v1312 = vperm.slane %v23, 1
    %v1313 = vadd.f32 %v1266, %v1312
    %v1314 = vadd.f32 %v1269, %v1312
    %v1315 = vadd.f32 %v1272, %v1312
    %v1316 = vadd.f32 %v1275, %v1312
    %v1317 = vadd.f32 %v1278, %v1312
    %v1318 = vadd.f32 %v1281, %v1312
    %v1319 = vadd.f32 %v1284, %v1312
    %v1320 = vadd.f32 %v1287, %v1312
    %v1321 = vadd.f32 %v1290, %v1312
    %v1322 = vadd.f32 %v1293, %v1312
    %v1323 = vadd.f32 %v1296, %v1312
    %v1324 = vadd.f32 %v1299, %v1312
    %v1325 = vadd.f32 %v1302, %v1312
    %v1326 = vadd.f32 %v1305, %v1312
    %v1327 = vadd.f32 %v1308, %v1312
    %v1328 = vadd.f32 %v1311, %v1312
    %1330 = vset.pattern.permute.xlu0 0
    %1331 = vperm.xlu0 %1330, %v1313
    %v1332 = vpop.permute.xlu0 %1331
    %1335 = vset.pattern.permute.xlu0 0
    %1336 = vperm.xlu0 %1335, %v1314
    %v1337 = vpop.permute.xlu0 %1336
    %v1339 = vmul.f32 %v24, %v1332
    %v1340 = vmul.f32 %v25, %v1337
    %1342 = vset.pattern.permute.xlu0 0
    %1343 = vperm.xlu0 %1342, %v1315
    %v1344 = vpop.permute.xlu0 %1343
    %1347 = vset.pattern.permute.xlu0 0
    %1348 = vperm.xlu0 %1347, %v1316
    %v1349 = vpop.permute.xlu0 %1348
    %v1351 = vmul.f32 %v26, %v1344
    %v1352 = vmul.f32 %v27, %v1349
    %v1353 = vadd.f32 %v1339, %v1351
    %v1354 = vadd.f32 %v1340, %v1352
    %1356 = vset.pattern.permute.xlu0 0
    %1357 = vperm.xlu0 %1356, %v1317
    %v1358 = vpop.permute.xlu0 %1357
    %1361 = vset.pattern.permute.xlu0 0
    %1362 = vperm.xlu0 %1361, %v1318
    %v1363 = vpop.permute.xlu0 %1362
    %v1365 = vmul.f32 %v28, %v1358
    %v1366 = vmul.f32 %v29, %v1363
    %v1367 = vadd.f32 %v1353, %v1365
    %v1368 = vadd.f32 %v1354, %v1366
    %1370 = vset.pattern.permute.xlu0 0
    %1371 = vperm.xlu0 %1370, %v1319
    %v1372 = vpop.permute.xlu0 %1371
    %1375 = vset.pattern.permute.xlu0 0
    %1376 = vperm.xlu0 %1375, %v1320
    %v1377 = vpop.permute.xlu0 %1376
    %v1379 = vmul.f32 %v30, %v1372
    %v1380 = vmul.f32 %v31, %v1377
    %v1381 = vadd.f32 %v1367, %v1379
    %v1382 = vadd.f32 %v1368, %v1380
    %1384 = vset.pattern.permute.xlu0 0
    %1385 = vperm.xlu0 %1384, %v1321
    %v1386 = vpop.permute.xlu0 %1385
    %1389 = vset.pattern.permute.xlu0 0
    %1390 = vperm.xlu0 %1389, %v1322
    %v1391 = vpop.permute.xlu0 %1390
    %v1393 = vmul.f32 %v32, %v1386
    %v1394 = vmul.f32 %v33, %v1391
    %v1395 = vadd.f32 %v1381, %v1393
    %v1396 = vadd.f32 %v1382, %v1394
    %1398 = vset.pattern.permute.xlu0 0
    %1399 = vperm.xlu0 %1398, %v1323
    %v1400 = vpop.permute.xlu0 %1399
    %1403 = vset.pattern.permute.xlu0 0
    %1404 = vperm.xlu0 %1403, %v1324
    %v1405 = vpop.permute.xlu0 %1404
    %v1407 = vmul.f32 %v34, %v1400
    %v1408 = vmul.f32 %v35, %v1405
    %v1409 = vadd.f32 %v1395, %v1407
    %v1410 = vadd.f32 %v1396, %v1408
    %1412 = vset.pattern.permute.xlu0 0
    %1413 = vperm.xlu0 %1412, %v1325
    %v1414 = vpop.permute.xlu0 %1413
    %1417 = vset.pattern.permute.xlu0 0
    %1418 = vperm.xlu0 %1417, %v1326
    %v1419 = vpop.permute.xlu0 %1418
    %v1421 = vmul.f32 %v36, %v1414
    %v1422 = vmul.f32 %v37, %v1419
    %v1423 = vadd.f32 %v1409, %v1421
    %v1424 = vadd.f32 %v1410, %v1422
    %1426 = vset.pattern.permute.xlu0 0
    %1427 = vperm.xlu0 %1426, %v1327
    %v1428 = vpop.permute.xlu0 %1427
    %1431 = vset.pattern.permute.xlu0 0
    %1432 = vperm.xlu0 %1431, %v1328
    %v1433 = vpop.permute.xlu0 %1432
    %v1435 = vmul.f32 %v38, %v1428
    %v1436 = vmul.f32 %v39, %v1433
    %v1437 = vadd.f32 %v1423, %v1435
    %v1438 = vadd.f32 %v1424, %v1436
    %s1439 = scalar_lea.vmem %s1, 64
    %v1440 = vld [vmem:[%s1439] sm:$0xff]
    %v1441 = vld [vmem:[%s1439 + $0x8] sm:$0xff]
    %v1442 = vld [vmem:[%s1439 + $0x10] sm:$0xff]
    %v1443 = vld [vmem:[%s1439 + $0x18] sm:$0xff]
    %v1444 = vld [vmem:[%s1439 + $0x20] sm:$0xff]
    %v1445 = vld [vmem:[%s1439 + $0x28] sm:$0xff]
    %v1446 = vld [vmem:[%s1439 + $0x30] sm:$0xff]
    %v1447 = vld [vmem:[%s1439 + $0x38] sm:$0xff]
    %s1448 = scalar_lea.vmem %s2, 16
    %v1449 = vld [vmem:[%s1448] sm:$0xf]
    %v1450 = vld [vmem:[%s1448 + $0x4] sm:$0xf]
    %v1451 = vld [vmem:[%s1448 + $0x8] sm:$0xf]
    %v1452 = vld [vmem:[%s1448 + $0xc] sm:$0xf]
    %v1454 = vrot.slane %v1438, 4
    %v1457 = vrot.slane %v1437, 4
    %vm1459 = vcmask 1043456
    %v1460 = vsel %vm1459, %v1454, %v1454
    %v1461 = vsel %vm1459, %v1457, %v1457
    %v1463 = vsel %vm52, %v1460, 0
    %v1466 = vsel %vm52, %v1461, 0
    %1468 = vmatpush.msra.mxu0 0.0
    %1469 = vmatpush.msra.mxu0 0.0
    %1470 = vmatpush.msra.mxu0 0.0
    %1471 = vmatpush.msra.mxu0 0.0
    %1472 = vmatpush.msra.mxu0 0.0
    %1473 = vmatpush.msra.mxu0 0.0
    %1474 = vmatpush.msra.mxu0 0.0
    %1475 = vmatpush.msra.mxu0 0.0
    %1476 = vmatpush.msra.mxu0 0.0
    %1477 = vmatpush.msra.mxu0 0.0
    %1478 = vmatpush.msra.mxu0 0.0
    %1479 = vmatpush.msra.mxu0 0.0
    %1480 = vmatpush.msra.mxu0 %v1447
    %1481 = vmatpush.msra.mxu0 %v1446
    %1482 = vmatpush.msra.mxu0 %v1445
    %1483 = vmatpush.msra.mxu0 %v1444
    %1484 = vmatmul.f32.gmra.mxu0 %v1463
    %v1485 = vpop.f32.mrf.mxu0
    %v1486 = vadd.f32 0.0, %v1485
    %1487 = vmatmul.f32.gmra.mxu0 %v1466
    %v1488 = vpop.f32.mrf.mxu0
    %v1489 = vadd.f32 0.0, %v1488
    %1490 = vdwg.mxu0
    %v1491 = vsel %vm52, %v1437, 0
    %v1493 = vsel %vm52, %v1438, 0
    %1495 = vmatpush.msra.mxu0 0.0
    %1496 = vmatpush.msra.mxu0 0.0
    %1497 = vmatpush.msra.mxu0 0.0
    %1498 = vmatpush.msra.mxu0 0.0
    %1499 = vmatpush.msra.mxu0 0.0
    %1500 = vmatpush.msra.mxu0 0.0
    %1501 = vmatpush.msra.mxu0 0.0
    %1502 = vmatpush.msra.mxu0 0.0
    %1503 = vmatpush.msra.mxu0 0.0
    %1504 = vmatpush.msra.mxu0 0.0
    %1505 = vmatpush.msra.mxu0 0.0
    %1506 = vmatpush.msra.mxu0 0.0
    %1507 = vmatpush.msra.mxu0 %v1443
    %1508 = vmatpush.msra.mxu0 %v1442
    %1509 = vmatpush.msra.mxu0 %v1441
    %1510 = vmatpush.msra.mxu0 %v1440
    %1511 = vmatmul.f32.gmra.mxu0 %v1491
    %v1512 = vpop.f32.mrf.mxu0
    %v1513 = vadd.f32 %v1486, %v1512
    %1514 = vmatmul.f32.gmra.mxu0 %v1493
    %v1515 = vpop.f32.mrf.mxu0
    %v1516 = vadd.f32 %v1489, %v1515
    %1517 = vdwg.mxu0
    %v1518 = vperm.slane %v22, 1
    %v1519 = vadd.f32 %v1513, %v1518
    %v1520 = vadd.f32 %v1516, %v1518
    %v1525 = vunpack.c.l.b16 %v1449
    %v1526 = vunpack.c.l.b16 %v1450
    %v1527 = vunpack.c.l.b16 %v1451
    %v1528 = vunpack.c.l.b16 %v1452
    %v1529 = vpack.c.b16 %v1526, %v1525
    %v1530 = vpack.c.b16 %v1528, %v1527
    %1533 = vmatpush.bf16.msra.mxu0 0
    %1534 = vmatpush.bf16.msra.mxu0 0
    %1535 = vmatpush.bf16.msra.mxu0 0
    %1536 = vmatpush.bf16.msra.mxu0 0
    %1537 = vmatpush.bf16.msra.mxu0 0
    %1538 = vmatpush.bf16.msra.mxu0 0
    %1539 = vmatpush.bf16.msra.mxu0 %v1530
    %1540 = vmatpush.bf16.msra.mxu0 %v1529
    %1541 = vmatmul.bf16.gmra.mxu0 %v261
    %v1542 = vpop.f32.mrf.mxu0
    %v1543 = vadd.f32 0.0, %v1542
    %v1544 = vpop.f32.mrf.mxu0
    %1545 = vdwg.mxu0
    %v1546 = vadd.f32 %v1519, %v1543
    %v1547 = vxor.u32 %v1546, 2147483648
    %v1548 = vmul.f32 %v1547, 1.442695
    %v1549 = vpow.pop %v1548
    %v1550 = vadd.f32 %v1549, 1.0
    %v1551 = vrcp.pop %v1550
    %v1552 = vmul.f32 %v1550, %v1551
    %v1553 = vsub.f32 1.0, %v1552
    %v1554 = vmul.f32 %v1551, %v1553
    %v1555 = vadd.f32 %v1551, %v1554
    %vm1556 = vweird.f32 %v1550
    %vm1557 = vweird.f32 %v1551
    %vm1558 = vmor %vm1556, %vm1557
    %v1559 = vsel %vm1558, %v1551, %v1555
    %v1560 = vand.u32 2147483647, %v1550
    %vm1561 = vcmp.eq.f32.partialorder %v1560, 8.507059e+37
    %v1562 = vand.u32 %v1550, 2147483648
    %v1563 = vor.u32 1.1754944e-38, %v1562
    %v1564 = vsel %vm1561, %v1563, %v1559
    %v1565 = vmul.f32 1.0, %v1564
    %v1566 = vtanh.pop %v1546
    %v1567 = vmul.f32 %v1565, 0.0
    %1569 = vrot.lane.b32.xlu0 %v1566, 64
    %v1570 = vpop.permute.xlu0 %1569
    %v1572 = vmul.f32 %v1565, %v1570
    %1574 = vrot.lane.b32.xlu0 %v1572, 32
    %v1575 = vpop.permute.xlu0 %1574
    %v1577 = vadd.f32 %v1567, %v1575
    %v1578 = vtanh.pop %v1577
    %1580 = vrot.lane.b32.xlu0 %v1578, 64
    %v1581 = vpop.permute.xlu0 %1580
    %v1583 = vmul.f32 %v1565, %v1581
    %v1584 = vpack.c.bf16 %v1583, %v1583
    %1586 = vrot.lane.b32.xlu0 %v1584, 32
    %v1587 = vpop.permute.xlu0 %1586
    %v1589 = vsel %vm52, %v1587, 0
    %1591 = vmatpush.bf16.msra.mxu0 0
    %1592 = vmatpush.bf16.msra.mxu0 0
    %1593 = vmatpush.bf16.msra.mxu0 0
    %1594 = vmatpush.bf16.msra.mxu0 0
    %1595 = vmatpush.bf16.msra.mxu0 0
    %1596 = vmatpush.bf16.msra.mxu0 0
    %1597 = vmatpush.bf16.msra.mxu0 %v1530
    %1598 = vmatpush.bf16.msra.mxu0 %v1529
    %1599 = vmatmul.bf16.gmra.mxu0 %v1589
    %v1600 = vpop.f32.mrf.mxu0
    %v1601 = vadd.f32 0.0, %v1600
    %v1602 = vpop.f32.mrf.mxu0
    %1603 = vdwg.mxu0
    %v1605 = vrot.slane %v1601, 4
    %v1607 = vadd.f32 %v1519, %v1605
    %v1608 = vxor.u32 %v1607, 2147483648
    %v1609 = vmul.f32 %v1608, 1.442695
    %v1610 = vpow.pop %v1609
    %v1611 = vadd.f32 %v1610, 1.0
    %v1612 = vrcp.pop %v1611
    %v1613 = vmul.f32 %v1611, %v1612
    %v1614 = vsub.f32 1.0, %v1613
    %v1615 = vmul.f32 %v1612, %v1614
    %v1616 = vadd.f32 %v1612, %v1615
    %vm1617 = vweird.f32 %v1611
    %vm1618 = vweird.f32 %v1612
    %vm1619 = vmor %vm1617, %vm1618
    %v1620 = vsel %vm1619, %v1612, %v1616
    %v1621 = vand.u32 2147483647, %v1611
    %vm1622 = vcmp.eq.f32.partialorder %v1621, 8.507059e+37
    %v1623 = vand.u32 %v1611, 2147483648
    %v1624 = vor.u32 1.1754944e-38, %v1623
    %v1625 = vsel %vm1622, %v1624, %v1620
    %v1626 = vmul.f32 1.0, %v1625
    %v1627 = vtanh.pop %v1607
    %v1629 = vrot.slane %v1577, 4
    %v1631 = vmul.f32 %v1626, %v1629
    %1633 = vrot.lane.b32.xlu0 %v1627, 64
    %v1634 = vpop.permute.xlu0 %1633
    %v1636 = vmul.f32 %v1626, %v1634
    %1638 = vrot.lane.b32.xlu0 %v1636, 32
    %v1639 = vpop.permute.xlu0 %1638
    %v1641 = vadd.f32 %v1631, %v1639
    %v1642 = vtanh.pop %v1641
    %1644 = vrot.lane.b32.xlu0 %v1642, 64
    %v1645 = vpop.permute.xlu0 %1644
    %v1647 = vmul.f32 %v1626, %v1645
    %v1648 = vpack.c.bf16 %v1647, %v1647
    %v1650 = vrot.slane %v1648, 2
    %1651 = vrot.lane.b32.xlu0 %v1650, 32
    %v1652 = vpop.permute.xlu0 %1651
    %v1654 = vsel %vm52, %v1652, 0
    %1656 = vmatpush.bf16.msra.mxu0 0
    %1657 = vmatpush.bf16.msra.mxu0 0
    %1658 = vmatpush.bf16.msra.mxu0 0
    %1659 = vmatpush.bf16.msra.mxu0 0
    %1660 = vmatpush.bf16.msra.mxu0 0
    %1661 = vmatpush.bf16.msra.mxu0 0
    %1662 = vmatpush.bf16.msra.mxu0 %v1530
    %1663 = vmatpush.bf16.msra.mxu0 %v1529
    %1664 = vmatmul.bf16.gmra.mxu0 %v1654
    %v1665 = vpop.f32.mrf.mxu0
    %v1666 = vadd.f32 0.0, %v1665
    %v1667 = vpop.f32.mrf.mxu0
    %1668 = vdwg.mxu0
    %v1669 = vadd.f32 %v1520, %v1666
    %v1670 = vxor.u32 %v1669, 2147483648
    %v1671 = vmul.f32 %v1670, 1.442695
    %v1672 = vpow.pop %v1671
    %v1673 = vadd.f32 %v1672, 1.0
    %v1674 = vrcp.pop %v1673
    %v1675 = vmul.f32 %v1673, %v1674
    %v1676 = vsub.f32 1.0, %v1675
    %v1677 = vmul.f32 %v1674, %v1676
    %v1678 = vadd.f32 %v1674, %v1677
    %vm1679 = vweird.f32 %v1673
    %vm1680 = vweird.f32 %v1674
    %vm1681 = vmor %vm1679, %vm1680
    %v1682 = vsel %vm1681, %v1674, %v1678
    %v1683 = vand.u32 2147483647, %v1673
    %vm1684 = vcmp.eq.f32.partialorder %v1683, 8.507059e+37
    %v1685 = vand.u32 %v1673, 2147483648
    %v1686 = vor.u32 1.1754944e-38, %v1685
    %v1687 = vsel %vm1684, %v1686, %v1682
    %v1688 = vmul.f32 1.0, %v1687
    %v1689 = vtanh.pop %v1669
    %v1691 = vrot.slane %v1641, 4
    %v1693 = vmul.f32 %v1688, %v1691
    %1695 = vrot.lane.b32.xlu0 %v1689, 64
    %v1696 = vpop.permute.xlu0 %1695
    %v1698 = vmul.f32 %v1688, %v1696
    %1700 = vrot.lane.b32.xlu0 %v1698, 32
    %v1701 = vpop.permute.xlu0 %1700
    %v1703 = vadd.f32 %v1693, %v1701
    %v1704 = vtanh.pop %v1703
    %1706 = vrot.lane.b32.xlu0 %v1704, 64
    %v1707 = vpop.permute.xlu0 %1706
    %v1709 = vmul.f32 %v1688, %v1707
    %v1710 = vpack.c.bf16 %v1709, %v1709
    %1712 = vrot.lane.b32.xlu0 %v1710, 32
    %v1713 = vpop.permute.xlu0 %1712
    %v1715 = vsel %vm52, %v1713, 0
    %1717 = vmatpush.bf16.msra.mxu0 0
    %1718 = vmatpush.bf16.msra.mxu0 0
    %1719 = vmatpush.bf16.msra.mxu0 0
    %1720 = vmatpush.bf16.msra.mxu0 0
    %1721 = vmatpush.bf16.msra.mxu0 0
    %1722 = vmatpush.bf16.msra.mxu0 0
    %1723 = vmatpush.bf16.msra.mxu0 %v1530
    %1724 = vmatpush.bf16.msra.mxu0 %v1529
    %1725 = vmatmul.bf16.gmra.mxu0 %v1715
    %v1726 = vpop.f32.mrf.mxu0
    %v1727 = vadd.f32 0.0, %v1726
    %v1728 = vpop.f32.mrf.mxu0
    %1729 = vdwg.mxu0
    %v1731 = vrot.slane %v1727, 4
    %v1733 = vadd.f32 %v1520, %v1731
    %v1734 = vxor.u32 %v1733, 2147483648
    %v1735 = vmul.f32 %v1734, 1.442695
    %v1736 = vpow.pop %v1735
    %v1737 = vadd.f32 %v1736, 1.0
    %v1738 = vrcp.pop %v1737
    %v1739 = vmul.f32 %v1737, %v1738
    %v1740 = vsub.f32 1.0, %v1739
    %v1741 = vmul.f32 %v1738, %v1740
    %v1742 = vadd.f32 %v1738, %v1741
    %vm1743 = vweird.f32 %v1737
    %vm1744 = vweird.f32 %v1738
    %vm1745 = vmor %vm1743, %vm1744
    %v1746 = vsel %vm1745, %v1738, %v1742
    %v1747 = vand.u32 2147483647, %v1737
    %vm1748 = vcmp.eq.f32.partialorder %v1747, 8.507059e+37
    %v1749 = vand.u32 %v1737, 2147483648
    %v1750 = vor.u32 1.1754944e-38, %v1749
    %v1751 = vsel %vm1748, %v1750, %v1746
    %v1752 = vmul.f32 1.0, %v1751
    %v1753 = vtanh.pop %v1733
    %v1755 = vrot.slane %v1703, 4
    %v1757 = vmul.f32 %v1752, %v1755
    %1759 = vrot.lane.b32.xlu0 %v1753, 64
    %v1760 = vpop.permute.xlu0 %1759
    %v1762 = vmul.f32 %v1752, %v1760
    %1764 = vrot.lane.b32.xlu0 %v1762, 32
    %v1765 = vpop.permute.xlu0 %1764
    %v1767 = vadd.f32 %v1757, %v1765
    %v1768 = vtanh.pop %v1767
    %1770 = vrot.lane.b32.xlu0 %v1768, 64
    %v1771 = vpop.permute.xlu0 %1770
    %v1773 = vmul.f32 %v1752, %v1771
    %1775 = vrot.lane.b32.xlu0 %v1583, 32
    %v1776 = vpop.permute.xlu0 %1775
    %v1779 = vrot.slane %v1773, 4
    %1780 = vrot.lane.b32.xlu0 %v1779, 32
    %v1781 = vpop.permute.xlu0 %1780
    %v1783 = vsel %vm1048, %v1776, %v1781
    %1785 = vrot.lane.b32.xlu0 %v1647, 32
    %v1786 = vpop.permute.xlu0 %1785
    %v1789 = vrot.slane %v1709, 4
    %1790 = vrot.lane.b32.xlu0 %v1789, 32
    %v1791 = vpop.permute.xlu0 %1790
    %v1793 = vsel %vm1048, %v1786, %v1791
    %1794 = vrot.lane.b32.xlu0 %v1709, 32
    %v1795 = vpop.permute.xlu0 %1794
    %v1797 = vrot.slane %v1647, 4
    %1798 = vrot.lane.b32.xlu0 %v1797, 32
    %v1799 = vpop.permute.xlu0 %1798
    %v1801 = vsel %vm1048, %v1795, %v1799
    %1802 = vrot.lane.b32.xlu0 %v1773, 32
    %v1803 = vpop.permute.xlu0 %1802
    %v1805 = vrot.slane %v1583, 4
    %1806 = vrot.lane.b32.xlu0 %v1805, 32
    %v1807 = vpop.permute.xlu0 %1806
    %v1809 = vsel %vm1048, %v1803, %v1807
    %v1810 = vsel %vm1459, %v1783, %v1793
    %v1811 = vsel %vm1459, %v1801, %v1809
    %v1812 = vperm.slane %v22, 5
    %v1813 = vmul.f32 %v1810, %v1812
    %v1814 = vmul.f32 %v1811, %v1812
    %v1815 = vsel %vm52, %v1813, 0.0
    %1816 = vadd.xlane.f32.xlu0 %v1815
    %v1817 = vpop.xlane.xlu0 %1816
    %v1818 = vsel %vm52, %v1814, 0.0
    %1819 = vadd.xlane.f32.xlu0 %v1818
    %v1820 = vpop.xlane.xlu0 %1819
    %v1821 = vperm.slane %v23, 2
    %v1822 = vadd.f32 %v1817, %v1821
    %v1823 = vadd.f32 %v1820, %v1821
    %1825 = vset.pattern.permute.xlu0 0
    %1826 = vperm.xlu0 %1825, %v1822
    %v1827 = vpop.permute.xlu0 %1826
    %v1829 = vmul.f32 %v1437, %v1827
    %v1831 = vrot.slane %v1829, 4
    %v1833 = vadd.f32 %v1829, %v1831
    %1835 = vset.pattern.permute.xlu0 0
    %1836 = vperm.xlu0 %1835, %v1823
    %v1837 = vpop.permute.xlu0 %1836
    %v1839 = vmul.f32 %v1438, %v1837
    %v1840 = vadd.f32 %v1833, %v1839
    %v1842 = vrot.slane %v1839, 4
    %v1844 = vadd.f32 %v1840, %v1842
    %s1845 = scalar_lea.vmem %s1, 128
    %v1846 = vld [vmem:[%s1845] sm:$0xff]
    %v1847 = vld [vmem:[%s1845 + $0x8] sm:$0xff]
    %v1848 = vld [vmem:[%s1845 + $0x10] sm:$0xff]
    %v1849 = vld [vmem:[%s1845 + $0x18] sm:$0xff]
    %v1850 = vld [vmem:[%s1845 + $0x20] sm:$0xff]
    %v1851 = vld [vmem:[%s1845 + $0x28] sm:$0xff]
    %v1852 = vld [vmem:[%s1845 + $0x30] sm:$0xff]
    %v1853 = vld [vmem:[%s1845 + $0x38] sm:$0xff]
    %s1854 = scalar_lea.vmem %s2, 32
    %v1855 = vld [vmem:[%s1854] sm:$0xf]
    %v1856 = vld [vmem:[%s1854 + $0x4] sm:$0xf]
    %v1857 = vld [vmem:[%s1854 + $0x8] sm:$0xf]
    %v1858 = vld [vmem:[%s1854 + $0xc] sm:$0xf]
    %v1860 = vrot.slane %v1844, 2
    %v1862 = vrot.slane %v1844, 6
    %vm1864 = vcmask 1041408
    %v1865 = vsel %vm1864, %v1860, %v1862
    %v1867 = vsel %vm52, %v1865, 0
    %1869 = vmatpush.msra.mxu0 0.0
    %1870 = vmatpush.msra.mxu0 0.0
    %1871 = vmatpush.msra.mxu0 0.0
    %1872 = vmatpush.msra.mxu0 0.0
    %1873 = vmatpush.msra.mxu0 0.0
    %1874 = vmatpush.msra.mxu0 0.0
    %1875 = vmatpush.msra.mxu0 0.0
    %1876 = vmatpush.msra.mxu0 0.0
    %1877 = vmatpush.msra.mxu0 0.0
    %1878 = vmatpush.msra.mxu0 0.0
    %1879 = vmatpush.msra.mxu0 0.0
    %1880 = vmatpush.msra.mxu0 0.0
    %1881 = vmatpush.msra.mxu0 %v1853
    %1882 = vmatpush.msra.mxu0 %v1852
    %1883 = vmatpush.msra.mxu0 %v1851
    %1884 = vmatpush.msra.mxu0 %v1850
    %1885 = vmatmul.f32.gmra.mxu0 %v1867
    %v1886 = vpop.f32.mrf.mxu0
    %v1887 = vadd.f32 0.0, %v1886
    %1888 = vdwg.mxu0
    %v1889 = vsel %vm52, %v1844, 0
    %1891 = vmatpush.msra.mxu0 0.0
    %1892 = vmatpush.msra.mxu0 0.0
    %1893 = vmatpush.msra.mxu0 0.0
    %1894 = vmatpush.msra.mxu0 0.0
    %1895 = vmatpush.msra.mxu0 0.0
    %1896 = vmatpush.msra.mxu0 0.0
    %1897 = vmatpush.msra.mxu0 0.0
    %1898 = vmatpush.msra.mxu0 0.0
    %1899 = vmatpush.msra.mxu0 0.0
    %1900 = vmatpush.msra.mxu0 0.0
    %1901 = vmatpush.msra.mxu0 0.0
    %1902 = vmatpush.msra.mxu0 0.0
    %1903 = vmatpush.msra.mxu0 %v1849
    %1904 = vmatpush.msra.mxu0 %v1848
    %1905 = vmatpush.msra.mxu0 %v1847
    %1906 = vmatpush.msra.mxu0 %v1846
    %1907 = vmatmul.f32.gmra.mxu0 %v1889
    %v1908 = vpop.f32.mrf.mxu0
    %v1909 = vadd.f32 %v1887, %v1908
    %1910 = vdwg.mxu0
    %v1911 = vperm.slane %v22, 2
    %v1912 = vadd.f32 %v1909, %v1911
    %v1917 = vunpack.c.l.b16 %v1855
    %v1918 = vunpack.c.l.b16 %v1856
    %v1919 = vunpack.c.l.b16 %v1857
    %v1920 = vunpack.c.l.b16 %v1858
    %v1921 = vpack.c.b16 %v1918, %v1917
    %v1922 = vpack.c.b16 %v1920, %v1919
    %1925 = vmatpush.bf16.msra.mxu0 0
    %1926 = vmatpush.bf16.msra.mxu0 0
    %1927 = vmatpush.bf16.msra.mxu0 0
    %1928 = vmatpush.bf16.msra.mxu0 0
    %1929 = vmatpush.bf16.msra.mxu0 0
    %1930 = vmatpush.bf16.msra.mxu0 0
    %1931 = vmatpush.bf16.msra.mxu0 %v1922
    %1932 = vmatpush.bf16.msra.mxu0 %v1921
    %1933 = vmatmul.bf16.gmra.mxu0 %v261
    %v1934 = vpop.f32.mrf.mxu0
    %v1935 = vadd.f32 0.0, %v1934
    %v1936 = vpop.f32.mrf.mxu0
    %1937 = vdwg.mxu0
    %v1938 = vadd.f32 %v1912, %v1935
    %v1939 = vxor.u32 %v1938, 2147483648
    %v1940 = vmul.f32 %v1939, 1.442695
    %v1941 = vpow.pop %v1940
    %v1942 = vadd.f32 %v1941, 1.0
    %v1943 = vrcp.pop %v1942
    %v1944 = vmul.f32 %v1942, %v1943
    %v1945 = vsub.f32 1.0, %v1944
    %v1946 = vmul.f32 %v1943, %v1945
    %v1947 = vadd.f32 %v1943, %v1946
    %vm1948 = vweird.f32 %v1942
    %vm1949 = vweird.f32 %v1943
    %vm1950 = vmor %vm1948, %vm1949
    %v1951 = vsel %vm1950, %v1943, %v1947
    %v1952 = vand.u32 2147483647, %v1942
    %vm1953 = vcmp.eq.f32.partialorder %v1952, 8.507059e+37
    %v1954 = vand.u32 %v1942, 2147483648
    %v1955 = vor.u32 1.1754944e-38, %v1954
    %v1956 = vsel %vm1953, %v1955, %v1951
    %v1957 = vmul.f32 1.0, %v1956
    %v1958 = vtanh.pop %v1938
    %v1959 = vmul.f32 %v1957, 0.0
    %1961 = vrot.lane.b32.xlu0 %v1958, 64
    %v1962 = vpop.permute.xlu0 %1961
    %v1964 = vmul.f32 %v1957, %v1962
    %1966 = vrot.lane.b32.xlu0 %v1964, 32
    %v1967 = vpop.permute.xlu0 %1966
    %v1969 = vadd.f32 %v1959, %v1967
    %v1970 = vtanh.pop %v1969
    %1972 = vrot.lane.b32.xlu0 %v1970, 64
    %v1973 = vpop.permute.xlu0 %1972
    %v1975 = vmul.f32 %v1957, %v1973
    %v1976 = vpack.c.bf16 %v1975, %v1975
    %1978 = vrot.lane.b32.xlu0 %v1976, 32
    %v1979 = vpop.permute.xlu0 %1978
    %v1981 = vsel %vm52, %v1979, 0
    %1983 = vmatpush.bf16.msra.mxu0 0
    %1984 = vmatpush.bf16.msra.mxu0 0
    %1985 = vmatpush.bf16.msra.mxu0 0
    %1986 = vmatpush.bf16.msra.mxu0 0
    %1987 = vmatpush.bf16.msra.mxu0 0
    %1988 = vmatpush.bf16.msra.mxu0 0
    %1989 = vmatpush.bf16.msra.mxu0 %v1922
    %1990 = vmatpush.bf16.msra.mxu0 %v1921
    %1991 = vmatmul.bf16.gmra.mxu0 %v1981
    %v1992 = vpop.f32.mrf.mxu0
    %v1993 = vadd.f32 0.0, %v1992
    %v1994 = vpop.f32.mrf.mxu0
    %1995 = vdwg.mxu0
    %v1997 = vrot.slane %v1993, 6
    %v1999 = vadd.f32 %v1912, %v1997
    %v2000 = vxor.u32 %v1999, 2147483648
    %v2001 = vmul.f32 %v2000, 1.442695
    %v2002 = vpow.pop %v2001
    %v2003 = vadd.f32 %v2002, 1.0
    %v2004 = vrcp.pop %v2003
    %v2005 = vmul.f32 %v2003, %v2004
    %v2006 = vsub.f32 1.0, %v2005
    %v2007 = vmul.f32 %v2004, %v2006
    %v2008 = vadd.f32 %v2004, %v2007
    %vm2009 = vweird.f32 %v2003
    %vm2010 = vweird.f32 %v2004
    %vm2011 = vmor %vm2009, %vm2010
    %v2012 = vsel %vm2011, %v2004, %v2008
    %v2013 = vand.u32 2147483647, %v2003
    %vm2014 = vcmp.eq.f32.partialorder %v2013, 8.507059e+37
    %v2015 = vand.u32 %v2003, 2147483648
    %v2016 = vor.u32 1.1754944e-38, %v2015
    %v2017 = vsel %vm2014, %v2016, %v2012
    %v2018 = vmul.f32 1.0, %v2017
    %v2019 = vtanh.pop %v1999
    %v2021 = vrot.slane %v1969, 6
    %v2023 = vmul.f32 %v2018, %v2021
    %2025 = vrot.lane.b32.xlu0 %v2019, 64
    %v2026 = vpop.permute.xlu0 %2025
    %v2028 = vmul.f32 %v2018, %v2026
    %2030 = vrot.lane.b32.xlu0 %v2028, 32
    %v2031 = vpop.permute.xlu0 %2030
    %v2033 = vadd.f32 %v2023, %v2031
    %v2034 = vtanh.pop %v2033
    %2036 = vrot.lane.b32.xlu0 %v2034, 64
    %v2037 = vpop.permute.xlu0 %2036
    %v2039 = vmul.f32 %v2018, %v2037
    %2041 = vrot.lane.b32.xlu0 %v1975, 32
    %v2042 = vpop.permute.xlu0 %2041
    %v2045 = vrot.slane %v2039, 2
    %2046 = vrot.lane.b32.xlu0 %v2045, 32
    %v2047 = vpop.permute.xlu0 %2046
    %v2049 = vsel %vm1048, %v2042, %v2047
    %2050 = vrot.lane.b32.xlu0 %v2039, 32
    %v2051 = vpop.permute.xlu0 %2050
    %v2053 = vrot.slane %v1975, 6
    %2054 = vrot.lane.b32.xlu0 %v2053, 32
    %v2055 = vpop.permute.xlu0 %2054
    %v2057 = vsel %vm1048, %v2051, %v2055
    %v2058 = vsel %vm1864, %v2049, %v2057
    %v2059 = vperm.slane %v22, 6
    %v2060 = vmul.f32 %v2058, %v2059
    %vm2061 = vcmask 257024
    %v2062 = vsel %vm2061, %v2060, 0.0
    %2063 = vadd.xlane.f32.xlu0 %v2062
    %v2064 = vpop.xlane.xlu0 %2063
    %v2065 = vperm.slane %v23, 3
    %v2066 = vadd.f32 %v2064, %v2065
    %2068 = vset.pattern.permute.xlu0 0
    %2069 = vperm.xlu0 %2068, %v2066
    %v2070 = vpop.permute.xlu0 %2069
    %v2072 = vmul.f32 %v1844, %v2070
    %v2074 = vrot.slane %v2072, 2
    %v2076 = vadd.f32 %v2072, %v2074
    %v2077 = vld [vmem:[%s3 + $0x20] sm:$0xff]
    %v2078 = vld [vmem:[%s3 + $0x28] sm:$0xff]
    %v2079 = vld [vmem:[%s3 + $0x30] sm:$0xff]
    %v2080 = vld [vmem:[%s3 + $0x38] sm:$0xff]
    %v2081 = vperm.slane %v22, 7
    %v2083 = vsel %vm52, %v2076, 0
    %2085 = vmatpush.msra.mxu0 0.0
    %2086 = vmatpush.msra.mxu0 0.0
    %2087 = vmatpush.msra.mxu0 0.0
    %2088 = vmatpush.msra.mxu0 0.0
    %2089 = vmatpush.msra.mxu0 0.0
    %2090 = vmatpush.msra.mxu0 0.0
    %2091 = vmatpush.msra.mxu0 0.0
    %2092 = vmatpush.msra.mxu0 0.0
    %2093 = vmatpush.msra.mxu0 0.0
    %2094 = vmatpush.msra.mxu0 0.0
    %2095 = vmatpush.msra.mxu0 0.0
    %2096 = vmatpush.msra.mxu0 0.0
    %2097 = vmatpush.msra.mxu0 %v2080
    %2098 = vmatpush.msra.mxu0 %v2079
    %2099 = vmatpush.msra.mxu0 %v2078
    %2100 = vmatpush.msra.mxu0 %v2077
    %2101 = vmatmul.f32.gmra.mxu0 %v2083
    %v2102 = vpop.f32.mrf.mxu0
    %v2103 = vadd.f32 %v2081, %v2102
    %2104 = vdwg.mxu0
    %v2105 = vmax.f32 %v2103, 0.0
    %v2106 = vld [vmem:[%s3 + $0x40] sm:$0xff]
    %v2107 = vld [vmem:[%s3 + $0x48] sm:$0xff]
    %v2108 = vld [vmem:[%s3 + $0x50] sm:$0xff]
    %v2109 = vld [vmem:[%s3 + $0x58] sm:$0xff]
    %v2110 = vperm.slane %v23, 0
    %v2112 = vsel %vm52, %v2105, 0
    %2114 = vmatpush.msra.mxu0 0.0
    %2115 = vmatpush.msra.mxu0 0.0
    %2116 = vmatpush.msra.mxu0 0.0
    %2117 = vmatpush.msra.mxu0 0.0
    %2118 = vmatpush.msra.mxu0 0.0
    %2119 = vmatpush.msra.mxu0 0.0
    %2120 = vmatpush.msra.mxu0 0.0
    %2121 = vmatpush.msra.mxu0 0.0
    %2122 = vmatpush.msra.mxu0 0.0
    %2123 = vmatpush.msra.mxu0 0.0
    %2124 = vmatpush.msra.mxu0 0.0
    %2125 = vmatpush.msra.mxu0 0.0
    %2126 = vmatpush.msra.mxu0 %v2109
    %2127 = vmatpush.msra.mxu0 %v2108
    %2128 = vmatpush.msra.mxu0 %v2107
    %2129 = vmatpush.msra.mxu0 %v2106
    %2130 = vmatmul.f32.gmra.mxu0 %v2112
    %v2131 = vpop.f32.mrf.mxu0
    %v2132 = vadd.f32 %v2110, %v2131
    %2133 = vdwg.mxu0
    %vm2134 = vcmask 25600
    %v2135 = vsel %vm2134, %v2132, -inf
    %2136 = vmax.xlane.f32.xlu0 %v2135
    %v2137 = vpop.xlane.xlu0 %2136
    %v2138 = vsub.f32 %v2132, %v2137
    %v2139 = vmul.f32 %v2138, 1.442695
    %v2140 = vpow.pop %v2139
    %v2141 = vsel %vm2134, %v2140, 0.0
    %2142 = vadd.xlane.f32.xlu0 %v2141
    %v2143 = vpop.xlane.xlu0 %2142
    %v2144 = vrcp.pop %v2143
    %v2145 = vmul.f32 %v2143, %v2144
    %v2146 = vsub.f32 1.0, %v2145
    %v2147 = vmul.f32 %v2144, %v2146
    %v2148 = vadd.f32 %v2144, %v2147
    %vm2149 = vweird.f32 %v2143
    %vm2150 = vweird.f32 %v2144
    %vm2151 = vmor %vm2149, %vm2150
    %v2152 = vsel %vm2151, %v2144, %v2148
    %v2153 = vand.u32 2147483647, %v2143
    %vm2154 = vcmp.eq.f32.partialorder %v2153, 8.507059e+37
    %v2155 = vand.u32 %v2143, 2147483648
    %v2156 = vor.u32 1.1754944e-38, %v2155
    %v2157 = vsel %vm2154, %v2156, %v2152
    %v2158 = vmul.f32 %v2140, %v2157
    %2159 = vst.msk [vmem:[#allocation2] sm:$0x3] %vm2134, %v2158
    // Predicated region
    $region22: #{tpu_custom_call.1} parent=1 // pred_check
      _
    $region23: #{tpu_custom_call.1} parent=1 // pred_check_branch
      %2161 = sbr.rel (0) target = $region25
    $region24: #{tpu_custom_call.1} parent=1 // pred_region
      %2163 = vsyncadd [#allocation3], 0
      %s2165 = sshll.u32 [#allocation2], 4
      %s2166 = int_to_ptr.vmem [resolvable:$true] %s2165
      %s2167 = sshll.u32 %s5, 4
      %s2168 = int_to_ptr.hbm [resolvable:$true] %s2167
      %2170 = dma.vmem_to_hbm [thread:$0]  %s2166, 32, %s2168, [#allocation3]
    $region25: #{tpu_custom_call.1} parent=1 // pred_fallthru
      _
    // Predicated region
    $region26: #{tpu_custom_call.1} parent=1 // pred_check
      _
    $region27: #{tpu_custom_call.1} parent=1 // pred_check_branch
      %2172 = sbr.rel (0) target = $region29
    $region28: #{tpu_custom_call.1} parent=1 // pred_region
      %2174 = dma.done [#allocation3], 32
    $region29: #{tpu_custom_call.1} parent=1 // pred_fallthru
      _
    %2175 = vsyncpa [#allocation3], 1

</llo_original>
